<compile_context>
chip_gen: v6e
topology: v6e:2x2x1
jax: 0.10.0
libtpu: 0.0.40
codegen_flags: <defaults>
</compile_context>

<pallas_src>
import math

import jax
import jax.numpy as jnp
from jax import lax
from jax.experimental import pallas as pl
from jax.experimental.pallas import tpu as pltpu

# ----------------------------- config ---------------------------------------
VOCAB = 100
VOCAB_PAD = 128           # lane-aligned one-hot width
MAX_POS = 16
TYPE_VOCAB = 2
BATCH = 2
SEQ = 8
HIDDEN = 32
HEADS = 4
HEAD_DIM = HIDDEN // HEADS
INTER = 64
LAYERS = 2
EPS = 1e-12               # BERT LayerNorm eps
N_TOK = BATCH * SEQ       # flattened (batch * seq) rows
OUT_LANES = 128           # lane-padded kernel output width


# ------------------------- in-kernel helpers --------------------------------
def _layernorm(x, gamma, beta):
    mu = jnp.mean(x, axis=-1, keepdims=True)
    var = jnp.mean((x - mu) ** 2, axis=-1, keepdims=True)
    return (x - mu) * lax.rsqrt(var + EPS) * gamma + beta


def _gelu(x):
    # TODO(synk): HF BERT uses exact erf-GELU; erf lowering in Mosaic is not
    # guaranteed, so we use the standard tanh approximation here.
    c = math.sqrt(2.0 / math.pi)
    return 0.5 * x * (1.0 + jnp.tanh(c * (x + 0.044715 * x * x * x)))


# ------------------------------ fused kernel ---------------------------------
def fused_bert_kernel(
    ids_ref,                         # (N_TOK, 1) int32
    word_ref,                        # (VOCAB_PAD, H) f32
    postype_ref,                     # (N_TOK, H) f32 : pos_emb + type_emb, batch-tiled
    embg_ref, embb_ref,              # (1, H) f32
    amask_ref,                       # (N_TOK, N_TOK) f32 block-diagonal batch mask
    hmask_ref,                       # (HEADS, 1, H) f32 per-head column mask
    wqk_ref,                         # (L, H, 2H) bf16  [Wq*scale | Wk]
    bqk_ref,                         # (L, 1, 2H) f32   [bq*scale | bk]
    wvo_ref,                         # (L, H, HEADS*H) bf16  folded Wv_g @ Wo_g per head
    bvo_ref,                         # (L, 1, HEADS*H) f32   folded bv_g @ Wo_g per head
    bo_ref,                          # (L, 1, H) f32
    ln1g_ref, ln1b_ref,              # (L, 1, H) f32
    w1_ref,                          # (L, H, I) bf16
    b1_ref,                          # (L, 1, I) f32
    w2_ref,                          # (L, I, H) bf16
    b2_ref,                          # (L, 1, H) f32
    ln2g_ref, ln2b_ref,              # (L, 1, H) f32
    pw_ref,                          # (H, H) bf16   pooler
    pb_ref,                          # (1, H) f32
    cw_ref,                          # (1, H) f32    classifier row (VPU lane-reduce)
    cb_ref,                          # (1, 1) f32
    o_ref,                           # (N_TOK, OUT_LANES) f32
):
    bf16 = jnp.bfloat16
    f32 = jnp.float32

    # ---- embedding: one-hot MXU gather (exact, f32) + positional/type + LayerNorm ----
    onehot = (lax.broadcasted_iota(jnp.int32, (N_TOK, VOCAB_PAD), 1)
              == ids_ref[...]).astype(f32)                                   # (N, 128)
    emb = jnp.dot(onehot, word_ref[...], preferred_element_type=f32) + postype_ref[...]
    x = _layernorm(emb, embg_ref[...], embb_ref[...])                        # (N, H) f32

    # TODO(synk): no padding/attention mask and token_type assumed all-zero
    # (matches calling BERT without attention_mask / token_type_ids).
    amask = amask_ref[...]
    hmask = hmask_ref[...]

    # ---- encoder layers (static unroll) ----
    for l in range(LAYERS):
        x_bf = x.astype(bf16)

        # Fused Q|K projection: one (N,H)@(H,2H) MXU pass (Q pre-scaled at pack time).
        qk = jnp.dot(x_bf, wqk_ref[l], preferred_element_type=f32) + bqk_ref[l]   # (N, 2H)

        # Folded value*output projection: one 128-lane-dense (N,H)@(H,HEADS*H) pass.
        vo = jnp.dot(x_bf, wvo_ref[l], preferred_element_type=f32) + bvo_ref[l]   # (N, 4H)
        vo_bf = vo.astype(bf16)

        # Per-head scores: head-masked Q against full-width K, single dot_general.
        # NOTE: checked that (4,16,32)x(16,32) / (16,16)x(16,32) contractions stay on
        # the MXU; all contractions have K>=16 and >=16-lane outputs.
        qh = (qk[:, :HIDDEN][None, :, :] * hmask).astype(bf16)                # (G, N, H)
        kf = qk[:, HIDDEN:].astype(bf16)                                      # (N, H)
        s = lax.dot_general(qh, kf, (((2,), (1,)), ((), ())),
                            preferred_element_type=f32)                      # (G, N, N)
        s = s + amask                                                         # batch mask
        s = s - jnp.max(s, axis=-1, keepdims=True)
        p = jnp.exp(s)
        p = p * pl.reciprocal(jnp.sum(p, axis=-1, keepdims=True), approx=True)
        p_bf = p.astype(bf16)

        # Context + output projection (already folded): attn = sum_g p_g @ vo_g + bo.
        acc = jnp.zeros((N_TOK, HIDDEN), f32)
        for g in range(HEADS):
            acc = acc + jnp.dot(p_bf[g], vo_bf[:, g * HIDDEN:(g + 1) * HIDDEN],
                                preferred_element_type=f32)                  # (N, H)
        h1 = _layernorm(x + acc + bo_ref[l], ln1g_ref[l], ln1b_ref[l])

        # Feed-forward (GELU) + add & LN.
        ff = _gelu(jnp.dot(h1.astype(bf16), w1_ref[l],
                           preferred_element_type=f32) + b1_ref[l])
        ff2 = jnp.dot(ff.astype(bf16), w2_ref[l],
                      preferred_element_type=f32) + b2_ref[l]
        x = _layernorm(h1 + ff2, ln2g_ref[l], ln2b_ref[l])

    # ---- pooler (dense + tanh) on ALL rows -> classifier (VPU reduce) -> sigmoid ----
    # CLS rows (0 and SEQ) are selected by a strided slice in the wrapper.
    pooled = jnp.tanh(jnp.dot(x.astype(bf16), pw_ref[...],
                              preferred_element_type=f32) + pb_ref[...])     # (N, H)
    logits = jnp.sum(pooled * cw_ref[...], axis=-1, keepdims=True) + cb_ref[...]  # (N, 1)
    probs = 1.0 / (1.0 + jnp.exp(-logits))                 # exact sigmoid (no approx)
    o_ref[...] = jnp.broadcast_to(probs, (N_TOK, OUT_LANES))   # lane-dense store


# ------------------------------ wrapper ---------------------------------------
def _vmem_spec():
    return pl.BlockSpec(memory_space=pltpu.MemorySpace.VMEM)


@jax.jit
def scam_detector_forward(packed, input_ids):
    ids = input_ids.reshape(N_TOK, 1).astype(jnp.int32)
    args = (
        ids,
        packed["word_emb"], packed["pos_type"],
        packed["emb_ln_g"], packed["emb_ln_b"],
        packed["attn_mask"], packed["head_mask"],
        packed["wqk"], packed["bqk"],
        packed["wvo"], packed["bvo"], packed["bo"],
        packed["ln1g"], packed["ln1b"],
        packed["w1"], packed["b1"],
        packed["w2"], packed["b2"],
        packed["ln2g"], packed["ln2b"],
        packed["pooler_w"], packed["pooler_b"],
        packed["cls_w"], packed["cls_b"],
    )
    out = pl.pallas_call(
        fused_bert_kernel,
        out_shape=jax.ShapeDtypeStruct((N_TOK, OUT_LANES), jnp.float32),
        in_specs=[_vmem_spec() for _ in args],
        out_specs=pl.BlockSpec(memory_space=pltpu.MemorySpace.VMEM),
    )(*args)
    # CLS token is row 0 of each sequence in the flattened (B*S) layout.
    return out[0::SEQ, :1]                                   # (B, 1) probabilities


# --------------------------- parameter init / packing --------------------------
def init_params(key):
    std = 0.02
    ks = iter(jax.random.split(key, 8 + LAYERS * 8))

    def nrm(shape):
        return (std * jax.random.normal(next(ks), shape)).astype(jnp.float32)

    params = {
        "word_emb": nrm((VOCAB, HIDDEN)),
        "pos_emb": nrm((MAX_POS, HIDDEN)),
        "type_emb": nrm((TYPE_VOCAB, HIDDEN)),
        "emb_ln_g": jnp.ones((1, HIDDEN), jnp.float32),
        "emb_ln_b": jnp.zeros((1, HIDDEN), jnp.float32),
        "pooler_w": nrm((HIDDEN, HIDDEN)),
        "pooler_b": jnp.zeros((1, HIDDEN), jnp.float32),
        "cls_w": nrm((HIDDEN, 1)),
        "cls_b": jnp.zeros((1, 1), jnp.float32),
        "layers": [],
    }
    for _ in range(LAYERS):
        layer = (
            nrm((HIDDEN, HIDDEN)), jnp.zeros((1, HIDDEN), jnp.float32),   # Wq, bq
            nrm((HIDDEN, HIDDEN)), jnp.zeros((1, HIDDEN), jnp.float32),   # Wk, bk
            nrm((HIDDEN, HIDDEN)), jnp.zeros((1, HIDDEN), jnp.float32),   # Wv, bv
            nrm((HIDDEN, HIDDEN)), jnp.zeros((1, HIDDEN), jnp.float32),   # Wo, bo
            jnp.ones((1, HIDDEN), jnp.float32), jnp.zeros((1, HIDDEN), jnp.float32),  # LN1
            nrm((HIDDEN, INTER)), jnp.zeros((1, INTER), jnp.float32),     # W1, b1
            nrm((INTER, HIDDEN)), jnp.zeros((1, HIDDEN), jnp.float32),    # W2, b2
            jnp.ones((1, HIDDEN), jnp.float32), jnp.zeros((1, HIDDEN), jnp.float32),  # LN2
        )
        params["layers"].append(layer)
    return params


def pack_params(params):
    """One-time, trace-level weight re-layout: pad vocab, fuse Q|K, pre-fold the
    1/sqrt(D) scale, fold Wv_g@Wo_g (and bv_g@Wo_g) per head, build the constant
    masks, stack layers and cast matmul weights to bf16.  Pure JAX; costs nothing
    per forward call."""
    bf = jnp.bfloat16
    scale = 1.0 / math.sqrt(HEAD_DIM)

    acc = {k: [] for k in ("wqk", "bqk", "wvo", "bvo", "bo",
                           "ln1g", "ln1b", "w1", "b1", "w2", "b2", "ln2g", "ln2b")}
    for (wq, bq, wk, bk, wv, bv, wo, bo, g1, be1,
         fw1, fb1, fw2, fb2, g2, be2) in params["layers"]:
        acc["wqk"].append(jnp.concatenate([wq * scale, wk], axis=1))        # (H, 2H)
        acc["bqk"].append(jnp.concatenate([bq * scale, bk], axis=1))        # (1, 2H)
        wvo_h, bvo_h = [], []
        for g in range(HEADS):
            sl = slice(g * HEAD_DIM, (g + 1) * HEAD_DIM)
            wvo_h.append(wv[:, sl] @ wo[sl, :])                             # (H, H)
            bvo_h.append(bv[:, sl] @ wo[sl, :])                             # (1, H)
        acc["wvo"].append(jnp.concatenate(wvo_h, axis=1))                   # (H, HEADS*H)
        acc["bvo"].append(jnp.concatenate(bvo_h, axis=1))                   # (1, HEADS*H)
        acc["bo"].append(bo)
        acc["ln1g"].append(g1); acc["ln1b"].append(be1)
        acc["w1"].append(fw1); acc["b1"].append(fb1)
        acc["w2"].append(fw2); acc["b2"].append(fb2)
        acc["ln2g"].append(g2); acc["ln2b"].append(be2)

    # Per-head column mask: head_mask[g, 0, d] = 1 iff column d belongs to head g.
    head_mask = ((jnp.arange(HIDDEN) // HEAD_DIM)[None, None, :]
                 == jnp.arange(HEADS)[:, None, None]).astype(jnp.float32)   # (G, 1, H)

    # Block-diagonal additive mask: rows of different batch elements must not attend
    # to each other in the flattened (B*S) layout.
    row_b = jnp.arange(N_TOK)[:, None] // SEQ
    col_b = jnp.arange(N_TOK)[None, :] // SEQ
    attn_mask = jnp.where(row_b == col_b, 0.0, -1e30).astype(jnp.float32)   # (N, N)

    pos_type = params["pos_emb"][:SEQ] + params["type_emb"][0][None]        # (S, H)
    pos_type = jnp.tile(pos_type, (BATCH, 1))                               # (N, H)

    word = jnp.pad(params["word_emb"], ((0, VOCAB_PAD - VOCAB), (0, 0)))    # (128, H)

    return {
        "word_emb": word, "pos_type": pos_type,
        "emb_ln_g": params["emb_ln_g"], "emb_ln_b": params["emb_ln_b"],
        "attn_mask": attn_mask, "head_mask": head_mask,
        "wqk": jnp.stack(acc["wqk"]).astype(bf), "bqk": jnp.stack(acc["bqk"]),
        "wvo": jnp.stack(acc["wvo"]).astype(bf), "bvo": jnp.stack(acc["bvo"]),
        "bo": jnp.stack(acc["bo"]),
        "ln1g": jnp.stack(acc["ln1g"]), "ln1b": jnp.stack(acc["ln1b"]),
        "w1": jnp.stack(acc["w1"]).astype(bf), "b1": jnp.stack(acc["b1"]),
        "w2": jnp.stack(acc["w2"]).astype(bf), "b2": jnp.stack(acc["b2"]),
        "ln2g": jnp.stack(acc["ln2g"]), "ln2b": jnp.stack(acc["ln2b"]),
        "pooler_w": params["pooler_w"].astype(bf),     # (H, H)
        "pooler_b": params["pooler_b"],                # (1, H)
        "cls_w": params["cls_w"].T,                    # (1, H)  classifier as lane row
        "cls_b": params["cls_b"],                      # (1, 1)
    }


# -------------------------------- main ------------------------------------------
if __name__ == "__main__":
    key = jax.random.PRNGKey(0)
    k_param, k_ids = jax.random.split(key)
    params = init_params(k_param)
    packed = pack_params(params)
    input_ids = jax.random.randint(k_ids, (BATCH, SEQ), 0, VOCAB, dtype=jnp.int32)

    out = scam_detector_forward(packed, input_ids)
    out = jax.block_until_ready(out)
    assert out.shape == (BATCH, 1)
    assert bool(jnp.all((out >= 0.0) & (out <= 1.0)))
    print("KERNEL_OK")
</pallas_src>

<mosaic_0001>
module attributes {stable_mosaic.version = 11 : i64} {
  func.func @fused_bert_kernel(%arg0: memref<16x1xi32, #tpu.memory_space<vmem>>, %arg1: memref<128x32xf32, #tpu.memory_space<vmem>>, %arg2: memref<16x32xf32, #tpu.memory_space<vmem>>, %arg3: memref<1x32xf32, #tpu.memory_space<vmem>>, %arg4: memref<1x32xf32, #tpu.memory_space<vmem>>, %arg5: memref<16x16xf32, #tpu.memory_space<vmem>>, %arg6: memref<4x1x32xf32, #tpu.memory_space<vmem>>, %arg7: memref<2x32x64xbf16, #tpu.memory_space<vmem>>, %arg8: memref<2x1x64xf32, #tpu.memory_space<vmem>>, %arg9: memref<2x32x128xbf16, #tpu.memory_space<vmem>>, %arg10: memref<2x1x128xf32, #tpu.memory_space<vmem>>, %arg11: memref<2x1x32xf32, #tpu.memory_space<vmem>>, %arg12: memref<2x1x32xf32, #tpu.memory_space<vmem>>, %arg13: memref<2x1x32xf32, #tpu.memory_space<vmem>>, %arg14: memref<2x32x64xbf16, #tpu.memory_space<vmem>>, %arg15: memref<2x1x64xf32, #tpu.memory_space<vmem>>, %arg16: memref<2x64x32xbf16, #tpu.memory_space<vmem>>, %arg17: memref<2x1x32xf32, #tpu.memory_space<vmem>>, %arg18: memref<2x1x32xf32, #tpu.memory_space<vmem>>, %arg19: memref<2x1x32xf32, #tpu.memory_space<vmem>>, %arg20: memref<32x32xbf16, #tpu.memory_space<vmem>>, %arg21: memref<1x32xf32, #tpu.memory_space<vmem>>, %arg22: memref<1x32xf32, #tpu.memory_space<vmem>>, %arg23: memref<1x1xf32, #tpu.memory_space<vmem>>, %arg24: memref<16x128xf32, #tpu.memory_space<vmem>>) attributes {dimension_semantics = [], scalar_prefetch = 0 : i64, scratch_operands = 0 : i64, tpu.core_type = #tpu.core_type<tc>} {
    %0 = tpu.iota {dimensions = array<i32: 1>} : vector<16x128xi32>
    %c0 = arith.constant 0 : index
    %c0_0 = arith.constant 0 : index
    %1 = vector.load %arg0[%c0, %c0_0] : memref<16x1xi32, #tpu.memory_space<vmem>>, vector<16x1xi32>
    %2 = vector.broadcast %1 : vector<16x1xi32> to vector<16x128xi32>
    %3 = arith.cmpi eq, %0, %2 : vector<16x128xi32>
    %4 = arith.extui %3 : vector<16x128xi1> to vector<16x128xi32>
    %5 = arith.sitofp %4 : vector<16x128xi32> to vector<16x128xf32>
    %c0_1 = arith.constant 0 : index
    %c0_2 = arith.constant 0 : index
    %6 = vector.load %arg1[%c0_1, %c0_2] : memref<128x32xf32, #tpu.memory_space<vmem>>, vector<128x32xf32>
    %cst = arith.constant dense<0.000000e+00> : vector<16x32xf32>
    %7 = tpu.matmul %5, %6, %cst {dimension_numbers = #tpu.dot_dimension_numbers<[1], [0], [0], [1], [0, 0, 1, 1], [], []>} : vector<16x128xf32>, vector<128x32xf32>, vector<16x32xf32> -> vector<16x32xf32>
    %c0_3 = arith.constant 0 : index
    %c0_4 = arith.constant 0 : index
    %8 = vector.load %arg2[%c0_3, %c0_4] : memref<16x32xf32, #tpu.memory_space<vmem>>, vector<16x32xf32>
    %9 = arith.addf %7, %8 : vector<16x32xf32>
    %c0_5 = arith.constant 0 : index
    %c0_6 = arith.constant 0 : index
    %10 = vector.load %arg3[%c0_5, %c0_6] : memref<1x32xf32, #tpu.memory_space<vmem>>, vector<1x32xf32>
    %c0_7 = arith.constant 0 : index
    %c0_8 = arith.constant 0 : index
    %11 = vector.load %arg4[%c0_7, %c0_8] : memref<1x32xf32, #tpu.memory_space<vmem>>, vector<1x32xf32>
    %cst_9 = arith.constant dense<0.000000e+00> : vector<16xf32>
    %12 = vector.multi_reduction <add>, %9, %cst_9 [1] : vector<16x32xf32> to vector<16xf32>
    %13 = vector.shape_cast %12 : vector<16xf32> to vector<16x1xf32>
    %cst_10 = arith.constant 3.200000e+01 : f32
    %14 = vector.broadcast %cst_10 : f32 to vector<16x1xf32>
    %15 = arith.divf %13, %14 : vector<16x1xf32>
    %16 = vector.broadcast %15 : vector<16x1xf32> to vector<16x32xf32>
    %17 = arith.subf %9, %16 : vector<16x32xf32>
    %18 = arith.mulf %17, %17 : vector<16x32xf32>
    %cst_11 = arith.constant dense<0.000000e+00> : vector<16xf32>
    %19 = vector.multi_reduction <add>, %18, %cst_11 [1] : vector<16x32xf32> to vector<16xf32>
    %20 = vector.shape_cast %19 : vector<16xf32> to vector<16x1xf32>
    %cst_12 = arith.constant 3.200000e+01 : f32
    %21 = vector.broadcast %cst_12 : f32 to vector<16x1xf32>
    %22 = arith.divf %20, %21 : vector<16x1xf32>
    %23 = vector.broadcast %15 : vector<16x1xf32> to vector<16x32xf32>
    %24 = arith.subf %9, %23 : vector<16x32xf32>
    %cst_13 = arith.constant 9.99999996E-13 : f32
    %25 = vector.broadcast %cst_13 : f32 to vector<16x1xf32>
    %26 = arith.addf %22, %25 : vector<16x1xf32>
    %27 = math.rsqrt %26 : vector<16x1xf32>
    %28 = vector.broadcast %27 : vector<16x1xf32> to vector<16x32xf32>
    %29 = arith.mulf %24, %28 : vector<16x32xf32>
    %30 = vector.broadcast %10 : vector<1x32xf32> to vector<16x32xf32>
    %31 = arith.mulf %29, %30 : vector<16x32xf32>
    %32 = vector.broadcast %11 : vector<1x32xf32> to vector<16x32xf32>
    %33 = arith.addf %31, %32 : vector<16x32xf32>
    %c0_14 = arith.constant 0 : index
    %c0_15 = arith.constant 0 : index
    %34 = vector.load %arg5[%c0_14, %c0_15] : memref<16x16xf32, #tpu.memory_space<vmem>>, vector<16x16xf32>
    %c0_16 = arith.constant 0 : index
    %c0_17 = arith.constant 0 : index
    %c0_18 = arith.constant 0 : index
    %35 = vector.load %arg6[%c0_16, %c0_17, %c0_18] : memref<4x1x32xf32, #tpu.memory_space<vmem>>, vector<4x1x32xf32>
    %36 = arith.truncf %33 : vector<16x32xf32> to vector<16x32xbf16>
    %c0_19 = arith.constant 0 : index
    %c0_20 = arith.constant 0 : index
    %c0_21 = arith.constant 0 : index
    %37 = vector.load %arg7[%c0_19, %c0_20, %c0_21] : memref<2x32x64xbf16, #tpu.memory_space<vmem>>, vector<1x32x64xbf16>
    %38 = vector.shape_cast %37 : vector<1x32x64xbf16> to vector<32x64xbf16>
    %cst_22 = arith.constant dense<0.000000e+00> : vector<16x64xf32>
    %39 = tpu.matmul %36, %38, %cst_22 {dimension_numbers = #tpu.dot_dimension_numbers<[1], [0], [0], [1], [0, 0, 1, 1], [], []>} : vector<16x32xbf16>, vector<32x64xbf16>, vector<16x64xf32> -> vector<16x64xf32>
    %c0_23 = arith.constant 0 : index
    %c0_24 = arith.constant 0 : index
    %c0_25 = arith.constant 0 : index
    %40 = vector.load %arg8[%c0_23, %c0_24, %c0_25] : memref<2x1x64xf32, #tpu.memory_space<vmem>>, vector<1x1x64xf32>
    %41 = vector.shape_cast %40 : vector<1x1x64xf32> to vector<1x64xf32>
    %42 = vector.broadcast %41 : vector<1x64xf32> to vector<16x64xf32>
    %43 = arith.addf %39, %42 : vector<16x64xf32>
    %c0_26 = arith.constant 0 : index
    %c0_27 = arith.constant 0 : index
    %c0_28 = arith.constant 0 : index
    %44 = vector.load %arg9[%c0_26, %c0_27, %c0_28] : memref<2x32x128xbf16, #tpu.memory_space<vmem>>, vector<1x32x128xbf16>
    %45 = vector.shape_cast %44 : vector<1x32x128xbf16> to vector<32x128xbf16>
    %cst_29 = arith.constant dense<0.000000e+00> : vector<16x128xf32>
    %46 = tpu.matmul %36, %45, %cst_29 {dimension_numbers = #tpu.dot_dimension_numbers<[1], [0], [0], [1], [0, 0, 1, 1], [], []>} : vector<16x32xbf16>, vector<32x128xbf16>, vector<16x128xf32> -> vector<16x128xf32>
    %c0_30 = arith.constant 0 : index
    %c0_31 = arith.constant 0 : index
    %c0_32 = arith.constant 0 : index
    %47 = vector.load %arg10[%c0_30, %c0_31, %c0_32] : memref<2x1x128xf32, #tpu.memory_space<vmem>>, vector<1x1x128xf32>
    %48 = vector.shape_cast %47 : vector<1x1x128xf32> to vector<1x128xf32>
    %49 = vector.broadcast %48 : vector<1x128xf32> to vector<16x128xf32>
    %50 = arith.addf %46, %49 : vector<16x128xf32>
    %51 = arith.truncf %50 : vector<16x128xf32> to vector<16x128xbf16>
    %52 = vector.extract_strided_slice %43 {offsets = [0, 0], sizes = [16, 32], strides = [1, 1]} : vector<16x64xf32> to vector<16x32xf32>
    %53 = vector.shape_cast %52 : vector<16x32xf32> to vector<1x16x32xf32>
    %54 = vector.broadcast %53 : vector<1x16x32xf32> to vector<4x16x32xf32>
    %55 = vector.broadcast %35 : vector<4x1x32xf32> to vector<4x16x32xf32>
    %56 = arith.mulf %54, %55 : vector<4x16x32xf32>
    %57 = arith.truncf %56 : vector<4x16x32xf32> to vector<4x16x32xbf16>
    %58 = vector.extract_strided_slice %43 {offsets = [0, 32], sizes = [16, 32], strides = [1, 1]} : vector<16x64xf32> to vector<16x32xf32>
    %59 = arith.truncf %58 : vector<16x32xf32> to vector<16x32xbf16>
    %cst_33 = arith.constant dense<0.000000e+00> : vector<4x16x16xf32>
    %60 = tpu.matmul %57, %59, %cst_33 {dimension_numbers = #tpu.dot_dimension_numbers<[2], [1], [0, 1], [0], [0, 0, 0, 1, 1, 0], [], []>} : vector<4x16x32xbf16>, vector<16x32xbf16>, vector<4x16x16xf32> -> vector<4x16x16xf32>
    %61 = vector.shape_cast %34 : vector<16x16xf32> to vector<1x16x16xf32>
    %62 = vector.broadcast %61 : vector<1x16x16xf32> to vector<4x16x16xf32>
    %63 = arith.addf %60, %62 : vector<4x16x16xf32>
    %cst_34 = arith.constant dense<0xFF800000> : vector<4x16xf32>
    %64 = vector.multi_reduction <maximumf>, %63, %cst_34 [2] : vector<4x16x16xf32> to vector<4x16xf32>
    %65 = vector.shape_cast %64 : vector<4x16xf32> to vector<4x16x1xf32>
    %66 = vector.broadcast %65 : vector<4x16x1xf32> to vector<4x16x16xf32>
    %67 = arith.subf %63, %66 : vector<4x16x16xf32>
    %68 = math.exp %67 : vector<4x16x16xf32>
    %cst_35 = arith.constant dense<0.000000e+00> : vector<4x16xf32>
    %69 = vector.multi_reduction <add>, %68, %cst_35 [2] : vector<4x16x16xf32> to vector<4x16xf32>
    %70 = vector.shape_cast %69 : vector<4x16xf32> to vector<4x16x1xf32>
    %71 = tpu.reciprocal %70 {approx = true} : vector<4x16x1xf32> -> vector<4x16x1xf32>
    %72 = vector.broadcast %71 : vector<4x16x1xf32> to vector<4x16x16xf32>
    %73 = arith.mulf %68, %72 : vector<4x16x16xf32>
    %74 = arith.truncf %73 : vector<4x16x16xf32> to vector<4x16x16xbf16>
    %cst_36 = arith.constant 0.000000e+00 : f32
    %75 = vector.broadcast %cst_36 : f32 to vector<16x32xf32>
    %76 = vector.extract_strided_slice %74 {offsets = [0, 0, 0], sizes = [1, 16, 16], strides = [1, 1, 1]} : vector<4x16x16xbf16> to vector<1x16x16xbf16>
    %77 = vector.shape_cast %76 : vector<1x16x16xbf16> to vector<16x16xbf16>
    %78 = vector.extract_strided_slice %51 {offsets = [0, 0], sizes = [16, 32], strides = [1, 1]} : vector<16x128xbf16> to vector<16x32xbf16>
    %cst_37 = arith.constant dense<0.000000e+00> : vector<16x32xf32>
    %79 = tpu.matmul %77, %78, %cst_37 {dimension_numbers = #tpu.dot_dimension_numbers<[1], [0], [0], [1], [0, 0, 1, 1], [], []>} : vector<16x16xbf16>, vector<16x32xbf16>, vector<16x32xf32> -> vector<16x32xf32>
    %80 = arith.addf %75, %79 : vector<16x32xf32>
    %81 = vector.extract_strided_slice %74 {offsets = [1, 0, 0], sizes = [1, 16, 16], strides = [1, 1, 1]} : vector<4x16x16xbf16> to vector<1x16x16xbf16>
    %82 = vector.shape_cast %81 : vector<1x16x16xbf16> to vector<16x16xbf16>
    %83 = vector.extract_strided_slice %51 {offsets = [0, 32], sizes = [16, 32], strides = [1, 1]} : vector<16x128xbf16> to vector<16x32xbf16>
    %cst_38 = arith.constant dense<0.000000e+00> : vector<16x32xf32>
    %84 = tpu.matmul %82, %83, %cst_38 {dimension_numbers = #tpu.dot_dimension_numbers<[1], [0], [0], [1], [0, 0, 1, 1], [], []>} : vector<16x16xbf16>, vector<16x32xbf16>, vector<16x32xf32> -> vector<16x32xf32>
    %85 = arith.addf %80, %84 : vector<16x32xf32>
    %86 = vector.extract_strided_slice %74 {offsets = [2, 0, 0], sizes = [1, 16, 16], strides = [1, 1, 1]} : vector<4x16x16xbf16> to vector<1x16x16xbf16>
    %87 = vector.shape_cast %86 : vector<1x16x16xbf16> to vector<16x16xbf16>
    %88 = vector.extract_strided_slice %51 {offsets = [0, 64], sizes = [16, 32], strides = [1, 1]} : vector<16x128xbf16> to vector<16x32xbf16>
    %cst_39 = arith.constant dense<0.000000e+00> : vector<16x32xf32>
    %89 = tpu.matmul %87, %88, %cst_39 {dimension_numbers = #tpu.dot_dimension_numbers<[1], [0], [0], [1], [0, 0, 1, 1], [], []>} : vector<16x16xbf16>, vector<16x32xbf16>, vector<16x32xf32> -> vector<16x32xf32>
    %90 = arith.addf %85, %89 : vector<16x32xf32>
    %91 = vector.extract_strided_slice %74 {offsets = [3, 0, 0], sizes = [1, 16, 16], strides = [1, 1, 1]} : vector<4x16x16xbf16> to vector<1x16x16xbf16>
    %92 = vector.shape_cast %91 : vector<1x16x16xbf16> to vector<16x16xbf16>
    %93 = vector.extract_strided_slice %51 {offsets = [0, 96], sizes = [16, 32], strides = [1, 1]} : vector<16x128xbf16> to vector<16x32xbf16>
    %cst_40 = arith.constant dense<0.000000e+00> : vector<16x32xf32>
    %94 = tpu.matmul %92, %93, %cst_40 {dimension_numbers = #tpu.dot_dimension_numbers<[1], [0], [0], [1], [0, 0, 1, 1], [], []>} : vector<16x16xbf16>, vector<16x32xbf16>, vector<16x32xf32> -> vector<16x32xf32>
    %95 = arith.addf %90, %94 : vector<16x32xf32>
    %96 = arith.addf %33, %95 : vector<16x32xf32>
    %c0_41 = arith.constant 0 : index
    %c0_42 = arith.constant 0 : index
    %c0_43 = arith.constant 0 : index
    %97 = vector.load %arg11[%c0_41, %c0_42, %c0_43] : memref<2x1x32xf32, #tpu.memory_space<vmem>>, vector<1x1x32xf32>
    %98 = vector.shape_cast %97 : vector<1x1x32xf32> to vector<1x32xf32>
    %99 = vector.broadcast %98 : vector<1x32xf32> to vector<16x32xf32>
    %100 = arith.addf %96, %99 : vector<16x32xf32>
    %c0_44 = arith.constant 0 : index
    %c0_45 = arith.constant 0 : index
    %c0_46 = arith.constant 0 : index
    %101 = vector.load %arg12[%c0_44, %c0_45, %c0_46] : memref<2x1x32xf32, #tpu.memory_space<vmem>>, vector<1x1x32xf32>
    %102 = vector.shape_cast %101 : vector<1x1x32xf32> to vector<1x32xf32>
    %c0_47 = arith.constant 0 : index
    %c0_48 = arith.constant 0 : index
    %c0_49 = arith.constant 0 : index
    %103 = vector.load %arg13[%c0_47, %c0_48, %c0_49] : memref<2x1x32xf32, #tpu.memory_space<vmem>>, vector<1x1x32xf32>
    %104 = vector.shape_cast %103 : vector<1x1x32xf32> to vector<1x32xf32>
    %cst_50 = arith.constant dense<0.000000e+00> : vector<16xf32>
    %105 = vector.multi_reduction <add>, %100, %cst_50 [1] : vector<16x32xf32> to vector<16xf32>
    %106 = vector.shape_cast %105 : vector<16xf32> to vector<16x1xf32>
    %cst_51 = arith.constant 3.200000e+01 : f32
    %107 = vector.broadcast %cst_51 : f32 to vector<16x1xf32>
    %108 = arith.divf %106, %107 : vector<16x1xf32>
    %109 = vector.broadcast %108 : vector<16x1xf32> to vector<16x32xf32>
    %110 = arith.subf %100, %109 : vector<16x32xf32>
    %111 = arith.mulf %110, %110 : vector<16x32xf32>
    %cst_52 = arith.constant dense<0.000000e+00> : vector<16xf32>
    %112 = vector.multi_reduction <add>, %111, %cst_52 [1] : vector<16x32xf32> to vector<16xf32>
    %113 = vector.shape_cast %112 : vector<16xf32> to vector<16x1xf32>
    %cst_53 = arith.constant 3.200000e+01 : f32
    %114 = vector.broadcast %cst_53 : f32 to vector<16x1xf32>
    %115 = arith.divf %113, %114 : vector<16x1xf32>
    %116 = vector.broadcast %108 : vector<16x1xf32> to vector<16x32xf32>
    %117 = arith.subf %100, %116 : vector<16x32xf32>
    %cst_54 = arith.constant 9.99999996E-13 : f32
    %118 = vector.broadcast %cst_54 : f32 to vector<16x1xf32>
    %119 = arith.addf %115, %118 : vector<16x1xf32>
    %120 = math.rsqrt %119 : vector<16x1xf32>
    %121 = vector.broadcast %120 : vector<16x1xf32> to vector<16x32xf32>
    %122 = arith.mulf %117, %121 : vector<16x32xf32>
    %123 = vector.broadcast %102 : vector<1x32xf32> to vector<16x32xf32>
    %124 = arith.mulf %122, %123 : vector<16x32xf32>
    %125 = vector.broadcast %104 : vector<1x32xf32> to vector<16x32xf32>
    %126 = arith.addf %124, %125 : vector<16x32xf32>
    %127 = arith.truncf %126 : vector<16x32xf32> to vector<16x32xbf16>
    %c0_55 = arith.constant 0 : index
    %c0_56 = arith.constant 0 : index
    %c0_57 = arith.constant 0 : index
    %128 = vector.load %arg14[%c0_55, %c0_56, %c0_57] : memref<2x32x64xbf16, #tpu.memory_space<vmem>>, vector<1x32x64xbf16>
    %129 = vector.shape_cast %128 : vector<1x32x64xbf16> to vector<32x64xbf16>
    %cst_58 = arith.constant dense<0.000000e+00> : vector<16x64xf32>
    %130 = tpu.matmul %127, %129, %cst_58 {dimension_numbers = #tpu.dot_dimension_numbers<[1], [0], [0], [1], [0, 0, 1, 1], [], []>} : vector<16x32xbf16>, vector<32x64xbf16>, vector<16x64xf32> -> vector<16x64xf32>
    %c0_59 = arith.constant 0 : index
    %c0_60 = arith.constant 0 : index
    %c0_61 = arith.constant 0 : index
    %131 = vector.load %arg15[%c0_59, %c0_60, %c0_61] : memref<2x1x64xf32, #tpu.memory_space<vmem>>, vector<1x1x64xf32>
    %132 = vector.shape_cast %131 : vector<1x1x64xf32> to vector<1x64xf32>
    %133 = vector.broadcast %132 : vector<1x64xf32> to vector<16x64xf32>
    %134 = arith.addf %130, %133 : vector<16x64xf32>
    %cst_62 = arith.constant 5.000000e-01 : f32
    %135 = vector.broadcast %cst_62 : f32 to vector<16x64xf32>
    %136 = arith.mulf %135, %134 : vector<16x64xf32>
    %cst_63 = arith.constant 4.471500e-02 : f32
    %137 = vector.broadcast %cst_63 : f32 to vector<16x64xf32>
    %138 = arith.mulf %137, %134 : vector<16x64xf32>
    %139 = arith.mulf %138, %134 : vector<16x64xf32>
    %140 = arith.mulf %139, %134 : vector<16x64xf32>
    %141 = arith.addf %134, %140 : vector<16x64xf32>
    %cst_64 = arith.constant 0.797884583 : f32
    %142 = vector.broadcast %cst_64 : f32 to vector<16x64xf32>
    %143 = arith.mulf %142, %141 : vector<16x64xf32>
    %144 = math.tanh %143 : vector<16x64xf32>
    %cst_65 = arith.constant 1.000000e+00 : f32
    %145 = vector.broadcast %cst_65 : f32 to vector<16x64xf32>
    %146 = arith.addf %145, %144 : vector<16x64xf32>
    %147 = arith.mulf %136, %146 : vector<16x64xf32>
    %148 = arith.truncf %147 : vector<16x64xf32> to vector<16x64xbf16>
    %c0_66 = arith.constant 0 : index
    %c0_67 = arith.constant 0 : index
    %c0_68 = arith.constant 0 : index
    %149 = vector.load %arg16[%c0_66, %c0_67, %c0_68] : memref<2x64x32xbf16, #tpu.memory_space<vmem>>, vector<1x64x32xbf16>
    %150 = vector.shape_cast %149 : vector<1x64x32xbf16> to vector<64x32xbf16>
    %cst_69 = arith.constant dense<0.000000e+00> : vector<16x32xf32>
    %151 = tpu.matmul %148, %150, %cst_69 {dimension_numbers = #tpu.dot_dimension_numbers<[1], [0], [0], [1], [0, 0, 1, 1], [], []>} : vector<16x64xbf16>, vector<64x32xbf16>, vector<16x32xf32> -> vector<16x32xf32>
    %c0_70 = arith.constant 0 : index
    %c0_71 = arith.constant 0 : index
    %c0_72 = arith.constant 0 : index
    %152 = vector.load %arg17[%c0_70, %c0_71, %c0_72] : memref<2x1x32xf32, #tpu.memory_space<vmem>>, vector<1x1x32xf32>
    %153 = vector.shape_cast %152 : vector<1x1x32xf32> to vector<1x32xf32>
    %154 = vector.broadcast %153 : vector<1x32xf32> to vector<16x32xf32>
    %155 = arith.addf %151, %154 : vector<16x32xf32>
    %156 = arith.addf %126, %155 : vector<16x32xf32>
    %c0_73 = arith.constant 0 : index
    %c0_74 = arith.constant 0 : index
    %c0_75 = arith.constant 0 : index
    %157 = vector.load %arg18[%c0_73, %c0_74, %c0_75] : memref<2x1x32xf32, #tpu.memory_space<vmem>>, vector<1x1x32xf32>
    %158 = vector.shape_cast %157 : vector<1x1x32xf32> to vector<1x32xf32>
    %c0_76 = arith.constant 0 : index
    %c0_77 = arith.constant 0 : index
    %c0_78 = arith.constant 0 : index
    %159 = vector.load %arg19[%c0_76, %c0_77, %c0_78] : memref<2x1x32xf32, #tpu.memory_space<vmem>>, vector<1x1x32xf32>
    %160 = vector.shape_cast %159 : vector<1x1x32xf32> to vector<1x32xf32>
    %cst_79 = arith.constant dense<0.000000e+00> : vector<16xf32>
    %161 = vector.multi_reduction <add>, %156, %cst_79 [1] : vector<16x32xf32> to vector<16xf32>
    %162 = vector.shape_cast %161 : vector<16xf32> to vector<16x1xf32>
    %cst_80 = arith.constant 3.200000e+01 : f32
    %163 = vector.broadcast %cst_80 : f32 to vector<16x1xf32>
    %164 = arith.divf %162, %163 : vector<16x1xf32>
    %165 = vector.broadcast %164 : vector<16x1xf32> to vector<16x32xf32>
    %166 = arith.subf %156, %165 : vector<16x32xf32>
    %167 = arith.mulf %166, %166 : vector<16x32xf32>
    %cst_81 = arith.constant dense<0.000000e+00> : vector<16xf32>
    %168 = vector.multi_reduction <add>, %167, %cst_81 [1] : vector<16x32xf32> to vector<16xf32>
    %169 = vector.shape_cast %168 : vector<16xf32> to vector<16x1xf32>
    %cst_82 = arith.constant 3.200000e+01 : f32
    %170 = vector.broadcast %cst_82 : f32 to vector<16x1xf32>
    %171 = arith.divf %169, %170 : vector<16x1xf32>
    %172 = vector.broadcast %164 : vector<16x1xf32> to vector<16x32xf32>
    %173 = arith.subf %156, %172 : vector<16x32xf32>
    %cst_83 = arith.constant 9.99999996E-13 : f32
    %174 = vector.broadcast %cst_83 : f32 to vector<16x1xf32>
    %175 = arith.addf %171, %174 : vector<16x1xf32>
    %176 = math.rsqrt %175 : vector<16x1xf32>
    %177 = vector.broadcast %176 : vector<16x1xf32> to vector<16x32xf32>
    %178 = arith.mulf %173, %177 : vector<16x32xf32>
    %179 = vector.broadcast %158 : vector<1x32xf32> to vector<16x32xf32>
    %180 = arith.mulf %178, %179 : vector<16x32xf32>
    %181 = vector.broadcast %160 : vector<1x32xf32> to vector<16x32xf32>
    %182 = arith.addf %180, %181 : vector<16x32xf32>
    %183 = arith.truncf %182 : vector<16x32xf32> to vector<16x32xbf16>
    %c1 = arith.constant 1 : index
    %c0_84 = arith.constant 0 : index
    %c0_85 = arith.constant 0 : index
    %184 = vector.load %arg7[%c1, %c0_84, %c0_85] : memref<2x32x64xbf16, #tpu.memory_space<vmem>>, vector<1x32x64xbf16>
    %185 = vector.shape_cast %184 : vector<1x32x64xbf16> to vector<32x64xbf16>
    %cst_86 = arith.constant dense<0.000000e+00> : vector<16x64xf32>
    %186 = tpu.matmul %183, %185, %cst_86 {dimension_numbers = #tpu.dot_dimension_numbers<[1], [0], [0], [1], [0, 0, 1, 1], [], []>} : vector<16x32xbf16>, vector<32x64xbf16>, vector<16x64xf32> -> vector<16x64xf32>
    %c1_87 = arith.constant 1 : index
    %c0_88 = arith.constant 0 : index
    %c0_89 = arith.constant 0 : index
    %187 = vector.load %arg8[%c1_87, %c0_88, %c0_89] : memref<2x1x64xf32, #tpu.memory_space<vmem>>, vector<1x1x64xf32>
    %188 = vector.shape_cast %187 : vector<1x1x64xf32> to vector<1x64xf32>
    %189 = vector.broadcast %188 : vector<1x64xf32> to vector<16x64xf32>
    %190 = arith.addf %186, %189 : vector<16x64xf32>
    %c1_90 = arith.constant 1 : index
    %c0_91 = arith.constant 0 : index
    %c0_92 = arith.constant 0 : index
    %191 = vector.load %arg9[%c1_90, %c0_91, %c0_92] : memref<2x32x128xbf16, #tpu.memory_space<vmem>>, vector<1x32x128xbf16>
    %192 = vector.shape_cast %191 : vector<1x32x128xbf16> to vector<32x128xbf16>
    %cst_93 = arith.constant dense<0.000000e+00> : vector<16x128xf32>
    %193 = tpu.matmul %183, %192, %cst_93 {dimension_numbers = #tpu.dot_dimension_numbers<[1], [0], [0], [1], [0, 0, 1, 1], [], []>} : vector<16x32xbf16>, vector<32x128xbf16>, vector<16x128xf32> -> vector<16x128xf32>
    %c1_94 = arith.constant 1 : index
    %c0_95 = arith.constant 0 : index
    %c0_96 = arith.constant 0 : index
    %194 = vector.load %arg10[%c1_94, %c0_95, %c0_96] : memref<2x1x128xf32, #tpu.memory_space<vmem>>, vector<1x1x128xf32>
    %195 = vector.shape_cast %194 : vector<1x1x128xf32> to vector<1x128xf32>
    %196 = vector.broadcast %195 : vector<1x128xf32> to vector<16x128xf32>
    %197 = arith.addf %193, %196 : vector<16x128xf32>
    %198 = arith.truncf %197 : vector<16x128xf32> to vector<16x128xbf16>
    %199 = vector.extract_strided_slice %190 {offsets = [0, 0], sizes = [16, 32], strides = [1, 1]} : vector<16x64xf32> to vector<16x32xf32>
    %200 = vector.shape_cast %199 : vector<16x32xf32> to vector<1x16x32xf32>
    %201 = vector.broadcast %200 : vector<1x16x32xf32> to vector<4x16x32xf32>
    %202 = vector.broadcast %35 : vector<4x1x32xf32> to vector<4x16x32xf32>
    %203 = arith.mulf %201, %202 : vector<4x16x32xf32>
    %204 = arith.truncf %203 : vector<4x16x32xf32> to vector<4x16x32xbf16>
    %205 = vector.extract_strided_slice %190 {offsets = [0, 32], sizes = [16, 32], strides = [1, 1]} : vector<16x64xf32> to vector<16x32xf32>
    %206 = arith.truncf %205 : vector<16x32xf32> to vector<16x32xbf16>
    %cst_97 = arith.constant dense<0.000000e+00> : vector<4x16x16xf32>
    %207 = tpu.matmul %204, %206, %cst_97 {dimension_numbers = #tpu.dot_dimension_numbers<[2], [1], [0, 1], [0], [0, 0, 0, 1, 1, 0], [], []>} : vector<4x16x32xbf16>, vector<16x32xbf16>, vector<4x16x16xf32> -> vector<4x16x16xf32>
    %208 = vector.shape_cast %34 : vector<16x16xf32> to vector<1x16x16xf32>
    %209 = vector.broadcast %208 : vector<1x16x16xf32> to vector<4x16x16xf32>
    %210 = arith.addf %207, %209 : vector<4x16x16xf32>
    %cst_98 = arith.constant dense<0xFF800000> : vector<4x16xf32>
    %211 = vector.multi_reduction <maximumf>, %210, %cst_98 [2] : vector<4x16x16xf32> to vector<4x16xf32>
    %212 = vector.shape_cast %211 : vector<4x16xf32> to vector<4x16x1xf32>
    %213 = vector.broadcast %212 : vector<4x16x1xf32> to vector<4x16x16xf32>
    %214 = arith.subf %210, %213 : vector<4x16x16xf32>
    %215 = math.exp %214 : vector<4x16x16xf32>
    %cst_99 = arith.constant dense<0.000000e+00> : vector<4x16xf32>
    %216 = vector.multi_reduction <add>, %215, %cst_99 [2] : vector<4x16x16xf32> to vector<4x16xf32>
    %217 = vector.shape_cast %216 : vector<4x16xf32> to vector<4x16x1xf32>
    %218 = tpu.reciprocal %217 {approx = true} : vector<4x16x1xf32> -> vector<4x16x1xf32>
    %219 = vector.broadcast %218 : vector<4x16x1xf32> to vector<4x16x16xf32>
    %220 = arith.mulf %215, %219 : vector<4x16x16xf32>
    %221 = arith.truncf %220 : vector<4x16x16xf32> to vector<4x16x16xbf16>
    %cst_100 = arith.constant 0.000000e+00 : f32
    %222 = vector.broadcast %cst_100 : f32 to vector<16x32xf32>
    %223 = vector.extract_strided_slice %221 {offsets = [0, 0, 0], sizes = [1, 16, 16], strides = [1, 1, 1]} : vector<4x16x16xbf16> to vector<1x16x16xbf16>
    %224 = vector.shape_cast %223 : vector<1x16x16xbf16> to vector<16x16xbf16>
    %225 = vector.extract_strided_slice %198 {offsets = [0, 0], sizes = [16, 32], strides = [1, 1]} : vector<16x128xbf16> to vector<16x32xbf16>
    %cst_101 = arith.constant dense<0.000000e+00> : vector<16x32xf32>
    %226 = tpu.matmul %224, %225, %cst_101 {dimension_numbers = #tpu.dot_dimension_numbers<[1], [0], [0], [1], [0, 0, 1, 1], [], []>} : vector<16x16xbf16>, vector<16x32xbf16>, vector<16x32xf32> -> vector<16x32xf32>
    %227 = arith.addf %222, %226 : vector<16x32xf32>
    %228 = vector.extract_strided_slice %221 {offsets = [1, 0, 0], sizes = [1, 16, 16], strides = [1, 1, 1]} : vector<4x16x16xbf16> to vector<1x16x16xbf16>
    %229 = vector.shape_cast %228 : vector<1x16x16xbf16> to vector<16x16xbf16>
    %230 = vector.extract_strided_slice %198 {offsets = [0, 32], sizes = [16, 32], strides = [1, 1]} : vector<16x128xbf16> to vector<16x32xbf16>
    %cst_102 = arith.constant dense<0.000000e+00> : vector<16x32xf32>
    %231 = tpu.matmul %229, %230, %cst_102 {dimension_numbers = #tpu.dot_dimension_numbers<[1], [0], [0], [1], [0, 0, 1, 1], [], []>} : vector<16x16xbf16>, vector<16x32xbf16>, vector<16x32xf32> -> vector<16x32xf32>
    %232 = arith.addf %227, %231 : vector<16x32xf32>
    %233 = vector.extract_strided_slice %221 {offsets = [2, 0, 0], sizes = [1, 16, 16], strides = [1, 1, 1]} : vector<4x16x16xbf16> to vector<1x16x16xbf16>
    %234 = vector.shape_cast %233 : vector<1x16x16xbf16> to vector<16x16xbf16>
    %235 = vector.extract_strided_slice %198 {offsets = [0, 64], sizes = [16, 32], strides = [1, 1]} : vector<16x128xbf16> to vector<16x32xbf16>
    %cst_103 = arith.constant dense<0.000000e+00> : vector<16x32xf32>
    %236 = tpu.matmul %234, %235, %cst_103 {dimension_numbers = #tpu.dot_dimension_numbers<[1], [0], [0], [1], [0, 0, 1, 1], [], []>} : vector<16x16xbf16>, vector<16x32xbf16>, vector<16x32xf32> -> vector<16x32xf32>
    %237 = arith.addf %232, %236 : vector<16x32xf32>
    %238 = vector.extract_strided_slice %221 {offsets = [3, 0, 0], sizes = [1, 16, 16], strides = [1, 1, 1]} : vector<4x16x16xbf16> to vector<1x16x16xbf16>
    %239 = vector.shape_cast %238 : vector<1x16x16xbf16> to vector<16x16xbf16>
    %240 = vector.extract_strided_slice %198 {offsets = [0, 96], sizes = [16, 32], strides = [1, 1]} : vector<16x128xbf16> to vector<16x32xbf16>
    %cst_104 = arith.constant dense<0.000000e+00> : vector<16x32xf32>
    %241 = tpu.matmul %239, %240, %cst_104 {dimension_numbers = #tpu.dot_dimension_numbers<[1], [0], [0], [1], [0, 0, 1, 1], [], []>} : vector<16x16xbf16>, vector<16x32xbf16>, vector<16x32xf32> -> vector<16x32xf32>
    %242 = arith.addf %237, %241 : vector<16x32xf32>
    %243 = arith.addf %182, %242 : vector<16x32xf32>
    %c1_105 = arith.constant 1 : index
    %c0_106 = arith.constant 0 : index
    %c0_107 = arith.constant 0 : index
    %244 = vector.load %arg11[%c1_105, %c0_106, %c0_107] : memref<2x1x32xf32, #tpu.memory_space<vmem>>, vector<1x1x32xf32>
    %245 = vector.shape_cast %244 : vector<1x1x32xf32> to vector<1x32xf32>
    %246 = vector.broadcast %245 : vector<1x32xf32> to vector<16x32xf32>
    %247 = arith.addf %243, %246 : vector<16x32xf32>
    %c1_108 = arith.constant 1 : index
    %c0_109 = arith.constant 0 : index
    %c0_110 = arith.constant 0 : index
    %248 = vector.load %arg12[%c1_108, %c0_109, %c0_110] : memref<2x1x32xf32, #tpu.memory_space<vmem>>, vector<1x1x32xf32>
    %249 = vector.shape_cast %248 : vector<1x1x32xf32> to vector<1x32xf32>
    %c1_111 = arith.constant 1 : index
    %c0_112 = arith.constant 0 : index
    %c0_113 = arith.constant 0 : index
    %250 = vector.load %arg13[%c1_111, %c0_112, %c0_113] : memref<2x1x32xf32, #tpu.memory_space<vmem>>, vector<1x1x32xf32>
    %251 = vector.shape_cast %250 : vector<1x1x32xf32> to vector<1x32xf32>
    %cst_114 = arith.constant dense<0.000000e+00> : vector<16xf32>
    %252 = vector.multi_reduction <add>, %247, %cst_114 [1] : vector<16x32xf32> to vector<16xf32>
    %253 = vector.shape_cast %252 : vector<16xf32> to vector<16x1xf32>
    %cst_115 = arith.constant 3.200000e+01 : f32
    %254 = vector.broadcast %cst_115 : f32 to vector<16x1xf32>
    %255 = arith.divf %253, %254 : vector<16x1xf32>
    %256 = vector.broadcast %255 : vector<16x1xf32> to vector<16x32xf32>
    %257 = arith.subf %247, %256 : vector<16x32xf32>
    %258 = arith.mulf %257, %257 : vector<16x32xf32>
    %cst_116 = arith.constant dense<0.000000e+00> : vector<16xf32>
    %259 = vector.multi_reduction <add>, %258, %cst_116 [1] : vector<16x32xf32> to vector<16xf32>
    %260 = vector.shape_cast %259 : vector<16xf32> to vector<16x1xf32>
    %cst_117 = arith.constant 3.200000e+01 : f32
    %261 = vector.broadcast %cst_117 : f32 to vector<16x1xf32>
    %262 = arith.divf %260, %261 : vector<16x1xf32>
    %263 = vector.broadcast %255 : vector<16x1xf32> to vector<16x32xf32>
    %264 = arith.subf %247, %263 : vector<16x32xf32>
    %cst_118 = arith.constant 9.99999996E-13 : f32
    %265 = vector.broadcast %cst_118 : f32 to vector<16x1xf32>
    %266 = arith.addf %262, %265 : vector<16x1xf32>
    %267 = math.rsqrt %266 : vector<16x1xf32>
    %268 = vector.broadcast %267 : vector<16x1xf32> to vector<16x32xf32>
    %269 = arith.mulf %264, %268 : vector<16x32xf32>
    %270 = vector.broadcast %249 : vector<1x32xf32> to vector<16x32xf32>
    %271 = arith.mulf %269, %270 : vector<16x32xf32>
    %272 = vector.broadcast %251 : vector<1x32xf32> to vector<16x32xf32>
    %273 = arith.addf %271, %272 : vector<16x32xf32>
    %274 = arith.truncf %273 : vector<16x32xf32> to vector<16x32xbf16>
    %c1_119 = arith.constant 1 : index
    %c0_120 = arith.constant 0 : index
    %c0_121 = arith.constant 0 : index
    %275 = vector.load %arg14[%c1_119, %c0_120, %c0_121] : memref<2x32x64xbf16, #tpu.memory_space<vmem>>, vector<1x32x64xbf16>
    %276 = vector.shape_cast %275 : vector<1x32x64xbf16> to vector<32x64xbf16>
    %cst_122 = arith.constant dense<0.000000e+00> : vector<16x64xf32>
    %277 = tpu.matmul %274, %276, %cst_122 {dimension_numbers = #tpu.dot_dimension_numbers<[1], [0], [0], [1], [0, 0, 1, 1], [], []>} : vector<16x32xbf16>, vector<32x64xbf16>, vector<16x64xf32> -> vector<16x64xf32>
    %c1_123 = arith.constant 1 : index
    %c0_124 = arith.constant 0 : index
    %c0_125 = arith.constant 0 : index
    %278 = vector.load %arg15[%c1_123, %c0_124, %c0_125] : memref<2x1x64xf32, #tpu.memory_space<vmem>>, vector<1x1x64xf32>
    %279 = vector.shape_cast %278 : vector<1x1x64xf32> to vector<1x64xf32>
    %280 = vector.broadcast %279 : vector<1x64xf32> to vector<16x64xf32>
    %281 = arith.addf %277, %280 : vector<16x64xf32>
    %cst_126 = arith.constant 5.000000e-01 : f32
    %282 = vector.broadcast %cst_126 : f32 to vector<16x64xf32>
    %283 = arith.mulf %282, %281 : vector<16x64xf32>
    %cst_127 = arith.constant 4.471500e-02 : f32
    %284 = vector.broadcast %cst_127 : f32 to vector<16x64xf32>
    %285 = arith.mulf %284, %281 : vector<16x64xf32>
    %286 = arith.mulf %285, %281 : vector<16x64xf32>
    %287 = arith.mulf %286, %281 : vector<16x64xf32>
    %288 = arith.addf %281, %287 : vector<16x64xf32>
    %cst_128 = arith.constant 0.797884583 : f32
    %289 = vector.broadcast %cst_128 : f32 to vector<16x64xf32>
    %290 = arith.mulf %289, %288 : vector<16x64xf32>
    %291 = math.tanh %290 : vector<16x64xf32>
    %cst_129 = arith.constant 1.000000e+00 : f32
    %292 = vector.broadcast %cst_129 : f32 to vector<16x64xf32>
    %293 = arith.addf %292, %291 : vector<16x64xf32>
    %294 = arith.mulf %283, %293 : vector<16x64xf32>
    %295 = arith.truncf %294 : vector<16x64xf32> to vector<16x64xbf16>
    %c1_130 = arith.constant 1 : index
    %c0_131 = arith.constant 0 : index
    %c0_132 = arith.constant 0 : index
    %296 = vector.load %arg16[%c1_130, %c0_131, %c0_132] : memref<2x64x32xbf16, #tpu.memory_space<vmem>>, vector<1x64x32xbf16>
    %297 = vector.shape_cast %296 : vector<1x64x32xbf16> to vector<64x32xbf16>
    %cst_133 = arith.constant dense<0.000000e+00> : vector<16x32xf32>
    %298 = tpu.matmul %295, %297, %cst_133 {dimension_numbers = #tpu.dot_dimension_numbers<[1], [0], [0], [1], [0, 0, 1, 1], [], []>} : vector<16x64xbf16>, vector<64x32xbf16>, vector<16x32xf32> -> vector<16x32xf32>
    %c1_134 = arith.constant 1 : index
    %c0_135 = arith.constant 0 : index
    %c0_136 = arith.constant 0 : index
    %299 = vector.load %arg17[%c1_134, %c0_135, %c0_136] : memref<2x1x32xf32, #tpu.memory_space<vmem>>, vector<1x1x32xf32>
    %300 = vector.shape_cast %299 : vector<1x1x32xf32> to vector<1x32xf32>
    %301 = vector.broadcast %300 : vector<1x32xf32> to vector<16x32xf32>
    %302 = arith.addf %298, %301 : vector<16x32xf32>
    %303 = arith.addf %273, %302 : vector<16x32xf32>
    %c1_137 = arith.constant 1 : index
    %c0_138 = arith.constant 0 : index
    %c0_139 = arith.constant 0 : index
    %304 = vector.load %arg18[%c1_137, %c0_138, %c0_139] : memref<2x1x32xf32, #tpu.memory_space<vmem>>, vector<1x1x32xf32>
    %305 = vector.shape_cast %304 : vector<1x1x32xf32> to vector<1x32xf32>
    %c1_140 = arith.constant 1 : index
    %c0_141 = arith.constant 0 : index
    %c0_142 = arith.constant 0 : index
    %306 = vector.load %arg19[%c1_140, %c0_141, %c0_142] : memref<2x1x32xf32, #tpu.memory_space<vmem>>, vector<1x1x32xf32>
    %307 = vector.shape_cast %306 : vector<1x1x32xf32> to vector<1x32xf32>
    %cst_143 = arith.constant dense<0.000000e+00> : vector<16xf32>
    %308 = vector.multi_reduction <add>, %303, %cst_143 [1] : vector<16x32xf32> to vector<16xf32>
    %309 = vector.shape_cast %308 : vector<16xf32> to vector<16x1xf32>
    %cst_144 = arith.constant 3.200000e+01 : f32
    %310 = vector.broadcast %cst_144 : f32 to vector<16x1xf32>
    %311 = arith.divf %309, %310 : vector<16x1xf32>
    %312 = vector.broadcast %311 : vector<16x1xf32> to vector<16x32xf32>
    %313 = arith.subf %303, %312 : vector<16x32xf32>
    %314 = arith.mulf %313, %313 : vector<16x32xf32>
    %cst_145 = arith.constant dense<0.000000e+00> : vector<16xf32>
    %315 = vector.multi_reduction <add>, %314, %cst_145 [1] : vector<16x32xf32> to vector<16xf32>
    %316 = vector.shape_cast %315 : vector<16xf32> to vector<16x1xf32>
    %cst_146 = arith.constant 3.200000e+01 : f32
    %317 = vector.broadcast %cst_146 : f32 to vector<16x1xf32>
    %318 = arith.divf %316, %317 : vector<16x1xf32>
    %319 = vector.broadcast %311 : vector<16x1xf32> to vector<16x32xf32>
    %320 = arith.subf %303, %319 : vector<16x32xf32>
    %cst_147 = arith.constant 9.99999996E-13 : f32
    %321 = vector.broadcast %cst_147 : f32 to vector<16x1xf32>
    %322 = arith.addf %318, %321 : vector<16x1xf32>
    %323 = math.rsqrt %322 : vector<16x1xf32>
    %324 = vector.broadcast %323 : vector<16x1xf32> to vector<16x32xf32>
    %325 = arith.mulf %320, %324 : vector<16x32xf32>
    %326 = vector.broadcast %305 : vector<1x32xf32> to vector<16x32xf32>
    %327 = arith.mulf %325, %326 : vector<16x32xf32>
    %328 = vector.broadcast %307 : vector<1x32xf32> to vector<16x32xf32>
    %329 = arith.addf %327, %328 : vector<16x32xf32>
    %330 = arith.truncf %329 : vector<16x32xf32> to vector<16x32xbf16>
    %c0_148 = arith.constant 0 : index
    %c0_149 = arith.constant 0 : index
    %331 = vector.load %arg20[%c0_148, %c0_149] : memref<32x32xbf16, #tpu.memory_space<vmem>>, vector<32x32xbf16>
    %cst_150 = arith.constant dense<0.000000e+00> : vector<16x32xf32>
    %332 = tpu.matmul %330, %331, %cst_150 {dimension_numbers = #tpu.dot_dimension_numbers<[1], [0], [0], [1], [0, 0, 1, 1], [], []>} : vector<16x32xbf16>, vector<32x32xbf16>, vector<16x32xf32> -> vector<16x32xf32>
    %c0_151 = arith.constant 0 : index
    %c0_152 = arith.constant 0 : index
    %333 = vector.load %arg21[%c0_151, %c0_152] : memref<1x32xf32, #tpu.memory_space<vmem>>, vector<1x32xf32>
    %334 = vector.broadcast %333 : vector<1x32xf32> to vector<16x32xf32>
    %335 = arith.addf %332, %334 : vector<16x32xf32>
    %336 = math.tanh %335 : vector<16x32xf32>
    %c0_153 = arith.constant 0 : index
    %c0_154 = arith.constant 0 : index
    %337 = vector.load %arg22[%c0_153, %c0_154] : memref<1x32xf32, #tpu.memory_space<vmem>>, vector<1x32xf32>
    %338 = vector.broadcast %337 : vector<1x32xf32> to vector<16x32xf32>
    %339 = arith.mulf %336, %338 : vector<16x32xf32>
    %cst_155 = arith.constant dense<0.000000e+00> : vector<16xf32>
    %340 = vector.multi_reduction <add>, %339, %cst_155 [1] : vector<16x32xf32> to vector<16xf32>
    %341 = vector.shape_cast %340 : vector<16xf32> to vector<16x1xf32>
    %c0_156 = arith.constant 0 : index
    %c0_157 = arith.constant 0 : index
    %342 = vector.load %arg23[%c0_156, %c0_157] : memref<1x1xf32, #tpu.memory_space<vmem>>, vector<1x1xf32>
    %343 = vector.broadcast %342 : vector<1x1xf32> to vector<16x1xf32>
    %344 = arith.addf %341, %343 : vector<16x1xf32>
    %cst_158 = arith.constant 0.000000e+00 : f32
    %345 = vector.broadcast %cst_158 : f32 to vector<16x1xf32>
    %346 = arith.subf %345, %344 : vector<16x1xf32>
    %347 = math.exp %346 : vector<16x1xf32>
    %cst_159 = arith.constant 1.000000e+00 : f32
    %348 = vector.broadcast %cst_159 : f32 to vector<16x1xf32>
    %349 = arith.addf %348, %347 : vector<16x1xf32>
    %cst_160 = arith.constant 1.000000e+00 : f32
    %350 = vector.broadcast %cst_160 : f32 to vector<16x1xf32>
    %351 = arith.divf %350, %349 : vector<16x1xf32>
    %352 = vector.shape_cast %351 : vector<16x1xf32> to vector<16x1xf32>
    %353 = vector.broadcast %352 : vector<16x1xf32> to vector<16x128xf32>
    %c0_161 = arith.constant 0 : index
    %c0_162 = arith.constant 0 : index
    %354 = vector.load %arg24[%c0_161, %c0_162] : memref<16x128xf32, #tpu.memory_space<vmem>>, vector<16x128xf32>
    tpu.vector_store %arg24[%c0_161, %c0_162], %353 {strides = array<i32>} : memref<16x128xf32, #tpu.memory_space<vmem>>, vector<16x128xf32>,
    return
  }
}

</mosaic_0001>

<llo_original>
// kernel: scam_detector_forward.1
$region0: #{scam_detector_forward.1}
  #allocation0 [shape = 'u32[]', space=smem, size = 0x4, offset = 0x4, fixed_abs, tag = 'smem constant byte address 0x4 - core index']
  #allocation1 [shape = 'u32[144,128]{1,0:T(1,128)}', space=vmem, size = 0x12000, scoped, tag = 'internal scratch']
  #allocation2 [shape = 'f32[1,1]{1,0:T(1,128)S(1)}', space=vmem, size = 0x200, scoped, tag = 'scoped memory for scam_detector_forward.1']
  %s0 = inlined_call_operand.vmem [shape: s32[16,1], index: 0, kind: input, shape index: {}]
  %s1 = inlined_call_operand.vmem [shape: f32[128,32], index: 1, kind: input, shape index: {}]
  %s2 = inlined_call_operand.vmem [shape: f32[16,32], index: 2, kind: input, shape index: {}]
  %s3 = inlined_call_operand.vmem [shape: f32[1,32], index: 3, kind: input, shape index: {}]
  %s4 = inlined_call_operand.vmem [shape: f32[1,32], index: 4, kind: input, shape index: {}]
  %s5 = inlined_call_operand.vmem [shape: f32[16,16], index: 5, kind: input, shape index: {}]
  %s6 = inlined_call_operand.vmem [shape: f32[4,1,32], index: 6, kind: input, shape index: {}]
  %s7 = inlined_call_operand.vmem [shape: bf16[2,32,64], index: 7, kind: input, shape index: {}]
  %s8 = inlined_call_operand.vmem [shape: f32[2,1,64], index: 8, kind: input, shape index: {}]
  %s9 = inlined_call_operand.vmem [shape: bf16[2,32,128], index: 9, kind: input, shape index: {}]
  %s10 = inlined_call_operand.vmem [shape: f32[2,1,128], index: 10, kind: input, shape index: {}]
  %s11 = inlined_call_operand.vmem [shape: f32[2,1,32], index: 11, kind: input, shape index: {}]
  %s12 = inlined_call_operand.vmem [shape: f32[2,1,32], index: 12, kind: input, shape index: {}]
  %s13 = inlined_call_operand.vmem [shape: f32[2,1,32], index: 13, kind: input, shape index: {}]
  %s14 = inlined_call_operand.vmem [shape: bf16[2,32,64], index: 14, kind: input, shape index: {}]
  %s15 = inlined_call_operand.vmem [shape: f32[2,1,64], index: 15, kind: input, shape index: {}]
  %s16 = inlined_call_operand.vmem [shape: bf16[2,64,32], index: 16, kind: input, shape index: {}]
  %s17 = inlined_call_operand.vmem [shape: f32[2,1,32], index: 17, kind: input, shape index: {}]
  %s18 = inlined_call_operand.vmem [shape: f32[2,1,32], index: 18, kind: input, shape index: {}]
  %s19 = inlined_call_operand.vmem [shape: f32[2,1,32], index: 19, kind: input, shape index: {}]
  %s20 = inlined_call_operand.vmem [shape: bf16[32,32], index: 20, kind: input, shape index: {}]
  %s21 = inlined_call_operand.vmem [shape: f32[1,32], index: 21, kind: input, shape index: {}]
  %s22 = inlined_call_operand.vmem [shape: f32[1,32], index: 22, kind: input, shape index: {}]
  %s23 = inlined_call_operand.<no memory space> [shape: f32[1,1], index: 23, kind: input, shape index: {}]
  %s24 = inlined_call_operand.vmem [shape: f32[16,128], index: 24, kind: output, shape index: {}]
  %s25 = sld [smem:[#allocation0]]
  $region106: #{scam_detector_forward.1} parent=0
    _
  %s27 = ssub.s32 1, %s25
  %s28 = scalar_select 0, %s27, %s25
  %v29 = vstv %s23
  %30 = vst [vmem:[#allocation2] sm:$0x1] %v29
  // Predicated region
  $region2: #{scam_detector_forward.1} parent=0 // pred_check
    _
  $region3: #{scam_detector_forward.1} parent=0 // pred_check_branch
    %32 = sbr.rel (0) target = $region5
  $region4: #{scam_detector_forward.1} parent=0 // pred_region
    _
  $region5: #{scam_detector_forward.1} parent=0 // pred_fallthru
    _
  // Predicated region
  $region6: #{scam_detector_forward.1} parent=0 // pred_check
    _
  $region7: #{scam_detector_forward.1} parent=0 // pred_check_branch
    %34 = sbr.rel (0) target = $region9
  $region8: #{scam_detector_forward.1} parent=0 // pred_region
    _
  $region9: #{scam_detector_forward.1} parent=0 // pred_fallthru
    _
  // Predicated region
  $region10: #{scam_detector_forward.1} parent=0 // pred_check
    _
  $region11: #{scam_detector_forward.1} parent=0 // pred_check_branch
    %36 = sbr.rel (0) target = $region13
  $region12: #{scam_detector_forward.1} parent=0 // pred_region
    _
  $region13: #{scam_detector_forward.1} parent=0 // pred_fallthru
    _
  // Predicated region
  $region14: #{scam_detector_forward.1} parent=0 // pred_check
    _
  $region15: #{scam_detector_forward.1} parent=0 // pred_check_branch
    %38 = sbr.rel (0) target = $region17
  $region16: #{scam_detector_forward.1} parent=0 // pred_region
    _
  $region17: #{scam_detector_forward.1} parent=0 // pred_fallthru
    _
  // Predicated region
  $region18: #{scam_detector_forward.1} parent=0 // pred_check
    _
  $region19: #{scam_detector_forward.1} parent=0 // pred_check_branch
    %40 = sbr.rel (0) target = $region21
  $region20: #{scam_detector_forward.1} parent=0 // pred_region
    _
  $region21: #{scam_detector_forward.1} parent=0 // pred_fallthru
    _
  // Predicated region
  $region22: #{scam_detector_forward.1} parent=0 // pred_check
    _
  $region23: #{scam_detector_forward.1} parent=0 // pred_check_branch
    %42 = sbr.rel (0) target = $region25
  $region24: #{scam_detector_forward.1} parent=0 // pred_region
    _
  $region25: #{scam_detector_forward.1} parent=0 // pred_fallthru
    _
  // Predicated region
  $region26: #{scam_detector_forward.1} parent=0 // pred_check
    _
  $region27: #{scam_detector_forward.1} parent=0 // pred_check_branch
    %44 = sbr.rel (0) target = $region29
  $region28: #{scam_detector_forward.1} parent=0 // pred_region
    _
  $region29: #{scam_detector_forward.1} parent=0 // pred_fallthru
    _
  // Predicated region
  $region30: #{scam_detector_forward.1} parent=0 // pred_check
    _
  $region31: #{scam_detector_forward.1} parent=0 // pred_check_branch
    %46 = sbr.rel (0) target = $region33
  $region32: #{scam_detector_forward.1} parent=0 // pred_region
    _
  $region33: #{scam_detector_forward.1} parent=0 // pred_fallthru
    _
  // Predicated region
  $region34: #{scam_detector_forward.1} parent=0 // pred_check
    _
  $region35: #{scam_detector_forward.1} parent=0 // pred_check_branch
    %48 = sbr.rel (0) target = $region37
  $region36: #{scam_detector_forward.1} parent=0 // pred_region
    _
  $region37: #{scam_detector_forward.1} parent=0 // pred_fallthru
    _
  // Predicated region
  $region38: #{scam_detector_forward.1} parent=0 // pred_check
    _
  $region39: #{scam_detector_forward.1} parent=0 // pred_check_branch
    %50 = sbr.rel (0) target = $region41
  $region40: #{scam_detector_forward.1} parent=0 // pred_region
    _
  $region41: #{scam_detector_forward.1} parent=0 // pred_fallthru
    _
  // Predicated region
  $region42: #{scam_detector_forward.1} parent=0 // pred_check
    _
  $region43: #{scam_detector_forward.1} parent=0 // pred_check_branch
    %52 = sbr.rel (0) target = $region45
  $region44: #{scam_detector_forward.1} parent=0 // pred_region
    _
  $region45: #{scam_detector_forward.1} parent=0 // pred_fallthru
    _
  // Predicated region
  $region46: #{scam_detector_forward.1} parent=0 // pred_check
    _
  $region47: #{scam_detector_forward.1} parent=0 // pred_check_branch
    %54 = sbr.rel (0) target = $region49
  $region48: #{scam_detector_forward.1} parent=0 // pred_region
    _
  $region49: #{scam_detector_forward.1} parent=0 // pred_fallthru
    _
  // Predicated region
  $region50: #{scam_detector_forward.1} parent=0 // pred_check
    _
  $region51: #{scam_detector_forward.1} parent=0 // pred_check_branch
    %56 = sbr.rel (0) target = $region53
  $region52: #{scam_detector_forward.1} parent=0 // pred_region
    _
  $region53: #{scam_detector_forward.1} parent=0 // pred_fallthru
    _
  // Predicated region
  $region54: #{scam_detector_forward.1} parent=0 // pred_check
    _
  $region55: #{scam_detector_forward.1} parent=0 // pred_check_branch
    %58 = sbr.rel (0) target = $region57
  $region56: #{scam_detector_forward.1} parent=0 // pred_region
    _
  $region57: #{scam_detector_forward.1} parent=0 // pred_fallthru
    _
  // Predicated region
  $region58: #{scam_detector_forward.1} parent=0 // pred_check
    _
  $region59: #{scam_detector_forward.1} parent=0 // pred_check_branch
    %60 = sbr.rel (0) target = $region61
  $region60: #{scam_detector_forward.1} parent=0 // pred_region
    _
  $region61: #{scam_detector_forward.1} parent=0 // pred_fallthru
    _
  // Predicated region
  $region62: #{scam_detector_forward.1} parent=0 // pred_check
    _
  $region63: #{scam_detector_forward.1} parent=0 // pred_check_branch
    %62 = sbr.rel (0) target = $region65
  $region64: #{scam_detector_forward.1} parent=0 // pred_region
    _
  $region65: #{scam_detector_forward.1} parent=0 // pred_fallthru
    _
  // Predicated region
  $region66: #{scam_detector_forward.1} parent=0 // pred_check
    _
  $region67: #{scam_detector_forward.1} parent=0 // pred_check_branch
    %64 = sbr.rel (0) target = $region69
  $region68: #{scam_detector_forward.1} parent=0 // pred_region
    _
  $region69: #{scam_detector_forward.1} parent=0 // pred_fallthru
    _
  // Predicated region
  $region70: #{scam_detector_forward.1} parent=0 // pred_check
    _
  $region71: #{scam_detector_forward.1} parent=0 // pred_check_branch
    %66 = sbr.rel (0) target = $region73
  $region72: #{scam_detector_forward.1} parent=0 // pred_region
    _
  $region73: #{scam_detector_forward.1} parent=0 // pred_fallthru
    _
  // Predicated region
  $region74: #{scam_detector_forward.1} parent=0 // pred_check
    _
  $region75: #{scam_detector_forward.1} parent=0 // pred_check_branch
    %68 = sbr.rel (0) target = $region77
  $region76: #{scam_detector_forward.1} parent=0 // pred_region
    _
  $region77: #{scam_detector_forward.1} parent=0 // pred_fallthru
    _
  // Predicated region
  $region78: #{scam_detector_forward.1} parent=0 // pred_check
    _
  $region79: #{scam_detector_forward.1} parent=0 // pred_check_branch
    %70 = sbr.rel (0) target = $region81
  $region80: #{scam_detector_forward.1} parent=0 // pred_region
    _
  $region81: #{scam_detector_forward.1} parent=0 // pred_fallthru
    _
  // Predicated region
  $region82: #{scam_detector_forward.1} parent=0 // pred_check
    _
  $region83: #{scam_detector_forward.1} parent=0 // pred_check_branch
    %72 = sbr.rel (0) target = $region85
  $region84: #{scam_detector_forward.1} parent=0 // pred_region
    _
  $region85: #{scam_detector_forward.1} parent=0 // pred_fallthru
    _
  // Predicated region
  $region86: #{scam_detector_forward.1} parent=0 // pred_check
    _
  $region87: #{scam_detector_forward.1} parent=0 // pred_check_branch
    %74 = sbr.rel (0) target = $region89
  $region88: #{scam_detector_forward.1} parent=0 // pred_region
    _
  $region89: #{scam_detector_forward.1} parent=0 // pred_fallthru
    _
  // Predicated region
  $region90: #{scam_detector_forward.1} parent=0 // pred_check
    _
  $region91: #{scam_detector_forward.1} parent=0 // pred_check_branch
    %76 = sbr.rel (0) target = $region93
  $region92: #{scam_detector_forward.1} parent=0 // pred_region
    _
  $region93: #{scam_detector_forward.1} parent=0 // pred_fallthru
    _
  // Predicated region
  $region94: #{scam_detector_forward.1} parent=0 // pred_check
    _
  $region95: #{scam_detector_forward.1} parent=0 // pred_check_branch
    %78 = sbr.rel (0) target = $region97
  $region96: #{scam_detector_forward.1} parent=0 // pred_region
    _
  $region97: #{scam_detector_forward.1} parent=0 // pred_fallthru
    _
  %v80 = vlaneseq
  %v81 = vand.u32 %v80, 127
  %v82 = vld [vmem:[%s0] sm:$0xff]
  %v83 = vld [vmem:[%s0 + $0x8] sm:$0xff]
  %84 = vset.pattern.permute.xlu0 0
  %85 = vperm.xlu0 %84, %v82
  %v86 = vpop.permute.xlu0 %85
  %87 = vset.pattern.permute.xlu0 0
  %88 = vperm.xlu0 %87, %v83
  %v89 = vpop.permute.xlu0 %88
  %vm90 = vcmp.eq.s32.totalorder %v81, %v86
  %vm91 = vcmp.eq.s32.totalorder %v81, %v89
  %v92 = vsel %vm90, 1, 0
  %v93 = vsel %vm91, 1, 0
  %v94 = vcvt.s32.f32 %v92
  %v95 = vcvt.s32.f32 %v93
  %v96 = vld [vmem:[%s1] sm:$0xff]
  %v97 = vld [vmem:[%s1 + $0x8] sm:$0xff]
  %v98 = vld [vmem:[%s1 + $0x10] sm:$0xff]
  %v99 = vld [vmem:[%s1 + $0x18] sm:$0xff]
  %v100 = vld [vmem:[%s1 + $0x20] sm:$0xff]
  %v101 = vld [vmem:[%s1 + $0x28] sm:$0xff]
  %v102 = vld [vmem:[%s1 + $0x30] sm:$0xff]
  %v103 = vld [vmem:[%s1 + $0x38] sm:$0xff]
  %v104 = vld [vmem:[%s1 + $0x40] sm:$0xff]
  %v105 = vld [vmem:[%s1 + $0x48] sm:$0xff]
  %v106 = vld [vmem:[%s1 + $0x50] sm:$0xff]
  %v107 = vld [vmem:[%s1 + $0x58] sm:$0xff]
  %v108 = vld [vmem:[%s1 + $0x60] sm:$0xff]
  %v109 = vld [vmem:[%s1 + $0x68] sm:$0xff]
  %v110 = vld [vmem:[%s1 + $0x70] sm:$0xff]
  %v111 = vld [vmem:[%s1 + $0x78] sm:$0xff]
  %v112 = vld [vmem:[%s2] sm:$0xff]
  %v113 = vld [vmem:[%s2 + $0x8] sm:$0xff]
  %114 = vmatprep.subr.mxu0 0.0
  %115 = vmatpush1.msra.mxu0 %v111
  %116 = vmatprep.subr.mxu0 0.0
  %117 = vmatpush1.msra.mxu0 %v110
  %118 = vmatprep.subr.mxu0 0.0
  %119 = vmatpush1.msra.mxu0 %v109
  %120 = vmatprep.subr.mxu0 0.0
  %121 = vmatpush1.msra.mxu0 %v108
  %122 = vmatprep.subr.mxu0 0.0
  %123 = vmatpush1.msra.mxu0 %v107
  %124 = vmatprep.subr.mxu0 0.0
  %125 = vmatpush1.msra.mxu0 %v106
  %126 = vmatprep.subr.mxu0 0.0
  %127 = vmatpush1.msra.mxu0 %v105
  %128 = vmatprep.subr.mxu0 0.0
  %129 = vmatpush1.msra.mxu0 %v104
  %130 = vmatprep.subr.mxu0 0.0
  %131 = vmatpush1.msra.mxu0 %v103
  %132 = vmatprep.subr.mxu0 0.0
  %133 = vmatpush1.msra.mxu0 %v102
  %134 = vmatprep.subr.mxu0 0.0
  %135 = vmatpush1.msra.mxu0 %v101
  %136 = vmatprep.subr.mxu0 0.0
  %137 = vmatpush1.msra.mxu0 %v100
  %138 = vmatprep.subr.mxu0 0.0
  %139 = vmatpush1.msra.mxu0 %v99
  %140 = vmatprep.subr.mxu0 0.0
  %141 = vmatpush1.msra.mxu0 %v98
  %142 = vmatprep.subr.mxu0 0.0
  %143 = vmatpush1.msra.mxu0 %v97
  %144 = vmatprep.subr.mxu0 0.0
  %145 = vmatpush1.msra.mxu0 %v96
  %146 = vmatprep.subr.mxu0 0.0
  %147 = vmatpush2.msra.mxu0 0.0
  %148 = vmatprep.subr.mxu0 0.0
  %149 = vmatpush2.msra.mxu0 0.0
  %150 = vmatprep.subr.mxu0 0.0
  %151 = vmatpush2.msra.mxu0 0.0
  %152 = vmatprep.subr.mxu0 0.0
  %153 = vmatpush2.msra.mxu0 0.0
  %154 = vmatprep.subr.mxu0 0.0
  %155 = vmatpush2.msra.mxu0 0.0
  %156 = vmatprep.subr.mxu0 0.0
  %157 = vmatpush2.msra.mxu0 0.0
  %158 = vmatprep.subr.mxu0 0.0
  %159 = vmatpush2.msra.mxu0 0.0
  %160 = vmatprep.subr.mxu0 0.0
  %161 = vmatpush2.msra.mxu0 0.0
  %162 = vmatprep.subr.mxu0 0.0
  %163 = vmatpush2.msra.mxu0 0.0
  %164 = vmatprep.subr.mxu0 0.0
  %165 = vmatpush2.msra.mxu0 0.0
  %166 = vmatprep.subr.mxu0 0.0
  %167 = vmatpush2.msra.mxu0 0.0
  %168 = vmatprep.subr.mxu0 0.0
  %169 = vmatpush2.msra.mxu0 0.0
  %170 = vmatprep.subr.mxu0 0.0
  %171 = vmatpush2.msra.mxu0 0.0
  %172 = vmatprep.subr.mxu0 0.0
  %173 = vmatpush2.msra.mxu0 0.0
  %174 = vmatprep.subr.mxu0 0.0
  %175 = vmatpush2.msra.mxu0 0.0
  %176 = vmatprep.subr.mxu0 0.0
  %177 = vmatpush2.msra.mxu0 0.0
  %178 = vmatprep.mubr.f32.mxu0 0.0
  %179 = vmatmul.mubr.f32.gmra.mxu0 %v94
  %v180 = vpop.f32.mrf.mxu0
  %v181 = vadd.f32 %v112, %v180
  %v182 = vpop.f32.mrf.mxu0
  %183 = vmatprep.mubr.f32.mxu0 0.0
  %184 = vmatmul.mubr.f32.gmra.mxu0 %v95
  %v185 = vpop.f32.mrf.mxu0
  %v186 = vadd.f32 %v113, %v185
  %v187 = vpop.f32.mrf.mxu0
  %188 = vdwg.mxu0
  %v189 = vld [vmem:[%s3] sm:$0x1]
  %v190 = vld [vmem:[%s4] sm:$0x1]
  %vm191 = vcmask 261120
  %v192 = vsel %vm191, %v181, 0.0
  %193 = vadd.xlane.f32.xlu0 %v192
  %v194 = vpop.xlane.xlu0 %193
  %v195 = vsel %vm191, %v186, 0.0
  %196 = vadd.xlane.f32.xlu0 %v195
  %v197 = vpop.xlane.xlu0 %196
  %v198 = vrcp.pop 32.0
  %v199 = vmul.f32 %v194, %v198
  %v200 = vmul.f32 %v197, %v198
  %v201 = vsub.f32 %v181, %v199
  %v202 = vsub.f32 %v186, %v200
  %v203 = vmul.f32 %v201, %v201
  %v204 = vmul.f32 %v202, %v202
  %v205 = vsel %vm191, %v203, 0.0
  %206 = vadd.xlane.f32.xlu0 %v205
  %v207 = vpop.xlane.xlu0 %206
  %v208 = vsel %vm191, %v204, 0.0
  %209 = vadd.xlane.f32.xlu0 %v208
  %v210 = vpop.xlane.xlu0 %209
  %v211 = vmul.f32 %v207, %v198
  %v212 = vmul.f32 %v210, %v198
  %v213 = vadd.f32 %v211, 1e-12
  %v214 = vadd.f32 %v212, 1e-12
  %v215 = vrsqrt.pop %v213
  %v216 = vrsqrt.pop %v214
  %v217 = vmul.f32 %v201, %v215
  %v218 = vmul.f32 %v202, %v216
  %v220 = vlaneseq
  %v221 = vshrl.u32 %v220, 7
  %v222 = vsub.s32 0, %v221
  %v223 = vrot.slane %v189, %v222
  %v225 = vmul.f32 %v217, %v223
  %v226 = vmul.f32 %v218, %v223
  %v228 = vlaneseq
  %v229 = vshrl.u32 %v228, 7
  %v230 = vsub.s32 0, %v229
  %v231 = vrot.slane %v190, %v230
  %v233 = vadd.f32 %v225, %v231
  %v234 = vadd.f32 %v226, %v231
  %v235 = vld [vmem:[%s5] sm:$0xff]
  %v236 = vld [vmem:[%s5 + $0x8] sm:$0xff]
  %v237 = vld [vmem:[%s6] sm:$0x1]
  %v238 = vld [vmem:[%s6 + $0x1] sm:$0x1]
  %v239 = vld [vmem:[%s6 + $0x2] sm:$0x1]
  %v240 = vld [vmem:[%s6 + $0x3] sm:$0x1]
  %v241 = vpack.c.bf16 %v234, %v233
  %v242 = vld [vmem:[%s7] sm:$0xf]
  %v243 = vld [vmem:[%s7 + $0x4] sm:$0xf]
  %v244 = vld [vmem:[%s7 + $0x8] sm:$0xf]
  %v245 = vld [vmem:[%s7 + $0xc] sm:$0xf]
  %v246 = vld [vmem:[%s8] sm:$0x1]
  %v248 = vlaneseq
  %v249 = vshrl.u32 %v248, 7
  %v250 = vsub.s32 0, %v249
  %v251 = vrot.slane %v246, %v250
  %v257 = vunpack.c.l.b16 %v242
  %v258 = vunpack.c.l.b16 %v243
  %v259 = vunpack.c.l.b16 %v244
  %v260 = vunpack.c.l.b16 %v245
  %v261 = vpack.c.b16 %v258, %v257
  %v262 = vpack.c.b16 %v260, %v259
  %v266 = vsel %vm191, %v241, 0
  %268 = vmatprep.subr.bf16.mxu0 0
  %269 = vmatpush1.bf16.msra.mxu0 0
  %270 = vmatprep.subr.bf16.mxu0 0
  %271 = vmatpush1.bf16.msra.mxu0 0
  %272 = vmatprep.subr.bf16.mxu0 0
  %273 = vmatpush1.bf16.msra.mxu0 0
  %274 = vmatprep.subr.bf16.mxu0 0
  %275 = vmatpush1.bf16.msra.mxu0 0
  %276 = vmatprep.subr.bf16.mxu0 0
  %277 = vmatpush1.bf16.msra.mxu0 0
  %278 = vmatprep.subr.bf16.mxu0 0
  %279 = vmatpush1.bf16.msra.mxu0 0
  %280 = vmatprep.subr.bf16.mxu0 0
  %281 = vmatpush1.bf16.msra.mxu0 %v262
  %282 = vmatprep.subr.bf16.mxu0 0
  %283 = vmatpush1.bf16.msra.mxu0 %v261
  %284 = vmatprep.subr.bf16.mxu0 0
  %285 = vmatpush2.bf16.msra.mxu0 0
  %286 = vmatprep.subr.bf16.mxu0 0
  %287 = vmatpush2.bf16.msra.mxu0 0
  %288 = vmatprep.subr.bf16.mxu0 0
  %289 = vmatpush2.bf16.msra.mxu0 0
  %290 = vmatprep.subr.bf16.mxu0 0
  %291 = vmatpush2.bf16.msra.mxu0 0
  %292 = vmatprep.subr.bf16.mxu0 0
  %293 = vmatpush2.bf16.msra.mxu0 0
  %294 = vmatprep.subr.bf16.mxu0 0
  %295 = vmatpush2.bf16.msra.mxu0 0
  %296 = vmatprep.subr.bf16.mxu0 0
  %297 = vmatpush2.bf16.msra.mxu0 0
  %298 = vmatprep.subr.bf16.mxu0 0
  %299 = vmatpush2.bf16.msra.mxu0 0
  %300 = vmatprep.mubr.bf16.mxu0 0
  %301 = vmatmul.mubr.bf16.gmra.mxu0 %v266
  %v302 = vpop.f32.mrf.mxu0
  %v303 = vadd.f32 %v251, %v302
  %v304 = vpop.f32.mrf.mxu0
  %v305 = vpop.f32.mrf.mxu0
  %v306 = vadd.f32 %v251, %v305
  %v307 = vpop.f32.mrf.mxu0
  %308 = vdwg.mxu0
  %v309 = vld [vmem:[%s9] sm:$0xf]
  %v310 = vld [vmem:[%s9 + $0x4] sm:$0xf]
  %v311 = vld [vmem:[%s9 + $0x8] sm:$0xf]
  %v312 = vld [vmem:[%s9 + $0xc] sm:$0xf]
  %v313 = vld [vmem:[%s10] sm:$0x1]
  %v315 = vlaneseq
  %v316 = vshrl.u32 %v315, 7
  %v317 = vsub.s32 0, %v316
  %v318 = vrot.slane %v313, %v317
  %v324 = vunpack.c.l.b16 %v309
  %v325 = vunpack.c.l.b16 %v310
  %v326 = vunpack.c.l.b16 %v311
  %v327 = vunpack.c.l.b16 %v312
  %v328 = vpack.c.b16 %v325, %v324
  %v329 = vpack.c.b16 %v327, %v326
  %332 = vmatprep.subr.bf16.mxu0 0
  %333 = vmatpush1.bf16.msra.mxu0 0
  %334 = vmatprep.subr.bf16.mxu0 0
  %335 = vmatpush1.bf16.msra.mxu0 0
  %336 = vmatprep.subr.bf16.mxu0 0
  %337 = vmatpush1.bf16.msra.mxu0 0
  %338 = vmatprep.subr.bf16.mxu0 0
  %339 = vmatpush1.bf16.msra.mxu0 0
  %340 = vmatprep.subr.bf16.mxu0 0
  %341 = vmatpush1.bf16.msra.mxu0 0
  %342 = vmatprep.subr.bf16.mxu0 0
  %343 = vmatpush1.bf16.msra.mxu0 0
  %344 = vmatprep.subr.bf16.mxu0 0
  %345 = vmatpush1.bf16.msra.mxu0 %v329
  %346 = vmatprep.subr.bf16.mxu0 0
  %347 = vmatpush1.bf16.msra.mxu0 %v328
  %348 = vmatprep.subr.bf16.mxu0 0
  %349 = vmatpush2.bf16.msra.mxu0 0
  %350 = vmatprep.subr.bf16.mxu0 0
  %351 = vmatpush2.bf16.msra.mxu0 0
  %352 = vmatprep.subr.bf16.mxu0 0
  %353 = vmatpush2.bf16.msra.mxu0 0
  %354 = vmatprep.subr.bf16.mxu0 0
  %355 = vmatpush2.bf16.msra.mxu0 0
  %356 = vmatprep.subr.bf16.mxu0 0
  %357 = vmatpush2.bf16.msra.mxu0 0
  %358 = vmatprep.subr.bf16.mxu0 0
  %359 = vmatpush2.bf16.msra.mxu0 0
  %360 = vmatprep.subr.bf16.mxu0 0
  %361 = vmatpush2.bf16.msra.mxu0 0
  %362 = vmatprep.subr.bf16.mxu0 0
  %363 = vmatpush2.bf16.msra.mxu0 0
  %364 = vmatprep.mubr.bf16.mxu0 0
  %365 = vmatmul.mubr.bf16.gmra.mxu0 %v266
  %v366 = vpop.f32.mrf.mxu0
  %v367 = vadd.f32 %v318, %v366
  %v368 = vpop.f32.mrf.mxu0
  %v369 = vpop.f32.mrf.mxu0
  %v370 = vadd.f32 %v318, %v369
  %v371 = vpop.f32.mrf.mxu0
  %372 = vdwg.mxu0
  %v373 = vpack.c.bf16 %v370, %v367
  %v378 = vlaneseq
  %v379 = vshrl.u32 %v378, 7
  %v380 = vsub.s32 0, %v379
  %v381 = vrot.slane %v237, %v380
  %v382 = vlaneseq
  %v383 = vshrl.u32 %v382, 7
  %v384 = vsub.s32 0, %v383
  %v385 = vrot.slane %v238, %v384
  %v386 = vlaneseq
  %v387 = vshrl.u32 %v386, 7
  %v388 = vsub.s32 0, %v387
  %v389 = vrot.slane %v239, %v388
  %v390 = vlaneseq
  %v391 = vshrl.u32 %v390, 7
  %v392 = vsub.s32 0, %v391
  %v393 = vrot.slane %v240, %v392
  %v398 = vmul.f32 %v303, %v381
  %v399 = vmul.f32 %v306, %v381
  %v400 = vmul.f32 %v303, %v385
  %v401 = vmul.f32 %v306, %v385
  %v402 = vmul.f32 %v303, %v389
  %v403 = vmul.f32 %v306, %v389
  %v404 = vmul.f32 %v303, %v393
  %v405 = vmul.f32 %v306, %v393
  %v406 = vpack.c.bf16 %v399, %v398
  %v407 = vpack.c.bf16 %v401, %v400
  %v408 = vpack.c.bf16 %v403, %v402
  %v409 = vpack.c.bf16 %v405, %v404
  %v410 = vpack.c.bf16 %v306, %v303
  %412 = vrot.lane.b32.xlu0 %v410, 96
  %v413 = vpop.permute.xlu0 %412
  %v415 = vsel %vm191, %v406, 0
  %v418 = vsel %vm191, %v407, 0
  %v421 = vsel %vm191, %v408, 0
  %v424 = vsel %vm191, %v409, 0
  %v427 = vsel %vm191, %v413, 0
  %429 = vmatprep.subr.bf16.mxu0 0
  %430 = vmatpush1.bf16.xpose.msra.mxu0 0
  %431 = vmatprep.subr.bf16.mxu0 0
  %432 = vmatpush1.bf16.xpose.msra.mxu0 0
  %433 = vmatprep.subr.bf16.mxu0 0
  %434 = vmatpush1.bf16.xpose.msra.mxu0 0
  %435 = vmatprep.subr.bf16.mxu0 0
  %436 = vmatpush1.bf16.xpose.msra.mxu0 0
  %437 = vmatprep.subr.bf16.mxu0 0
  %438 = vmatpush1.bf16.xpose.msra.mxu0 0
  %439 = vmatprep.subr.bf16.mxu0 0
  %440 = vmatpush1.bf16.xpose.msra.mxu0 0
  %441 = vmatprep.subr.bf16.mxu0 0
  %442 = vmatpush1.bf16.xpose.msra.mxu0 0
  %443 = vmatprep.subr.bf16.mxu0 0
  %444 = vmatpush1.bf16.xpose.msra.mxu0 %v427
  %445 = vmatprep.subr.bf16.mxu0 0
  %446 = vmatpush2.bf16.xpose.msra.mxu0 0
  %447 = vmatprep.subr.bf16.mxu0 0
  %448 = vmatpush2.bf16.xpose.msra.mxu0 0
  %449 = vmatprep.subr.bf16.mxu0 0
  %450 = vmatpush2.bf16.xpose.msra.mxu0 0
  %451 = vmatprep.subr.bf16.mxu0 0
  %452 = vmatpush2.bf16.xpose.msra.mxu0 0
  %453 = vmatprep.subr.bf16.mxu0 0
  %454 = vmatpush2.bf16.xpose.msra.mxu0 0
  %455 = vmatprep.subr.bf16.mxu0 0
  %456 = vmatpush2.bf16.xpose.msra.mxu0 0
  %457 = vmatprep.subr.bf16.mxu0 0
  %458 = vmatpush2.bf16.xpose.msra.mxu0 0
  %459 = vmatprep.subr.bf16.mxu0 0
  %460 = vmatpush2.bf16.xpose.msra.mxu0 0
  %461 = vmatprep.mubr.bf16.mxu0 0
  %462 = vmatmul.mubr.bf16.gmra.mxu0 %v415
  %v463 = vpop.f32.mrf.mxu0
  %v464 = vadd.f32 %v235, %v463
  %v465 = vpop.f32.mrf.mxu0
  %v466 = vpop.f32.mrf.mxu0
  %v467 = vadd.f32 %v236, %v466
  %v468 = vpop.f32.mrf.mxu0
  %469 = vmatprep.mubr.bf16.mxu0 0
  %470 = vmatmul.mubr.bf16.gmra.mxu0 %v418
  %v471 = vpop.f32.mrf.mxu0
  %v472 = vadd.f32 %v235, %v471
  %v473 = vpop.f32.mrf.mxu0
  %v474 = vpop.f32.mrf.mxu0
  %v475 = vadd.f32 %v236, %v474
  %v476 = vpop.f32.mrf.mxu0
  %477 = vmatprep.mubr.bf16.mxu0 0
  %478 = vmatmul.mubr.bf16.gmra.mxu0 %v421
  %v479 = vpop.f32.mrf.mxu0
  %v480 = vadd.f32 %v235, %v479
  %v481 = vpop.f32.mrf.mxu0
  %v482 = vpop.f32.mrf.mxu0
  %v483 = vadd.f32 %v236, %v482
  %v484 = vpop.f32.mrf.mxu0
  %485 = vmatprep.mubr.bf16.mxu0 0
  %486 = vmatmul.mubr.bf16.gmra.mxu0 %v424
  %v487 = vpop.f32.mrf.mxu0
  %v488 = vadd.f32 %v235, %v487
  %v489 = vpop.f32.mrf.mxu0
  %v490 = vpop.f32.mrf.mxu0
  %v491 = vadd.f32 %v236, %v490
  %v492 = vpop.f32.mrf.mxu0
  %493 = vdwg.mxu0
  %vm494 = vcmask 130048
  %v495 = vsel %vm494, %v464, -inf
  %496 = vmax.xlane.f32.xlu0 %v495
  %v497 = vpop.xlane.xlu0 %496
  %v498 = vsel %vm494, %v467, -inf
  %499 = vmax.xlane.f32.xlu0 %v498
  %v500 = vpop.xlane.xlu0 %499
  %v501 = vsel %vm494, %v472, -inf
  %502 = vmax.xlane.f32.xlu0 %v501
  %v503 = vpop.xlane.xlu0 %502
  %v504 = vsel %vm494, %v475, -inf
  %505 = vmax.xlane.f32.xlu0 %v504
  %v506 = vpop.xlane.xlu0 %505
  %v507 = vsel %vm494, %v480, -inf
  %508 = vmax.xlane.f32.xlu0 %v507
  %v509 = vpop.xlane.xlu0 %508
  %v510 = vsel %vm494, %v483, -inf
  %511 = vmax.xlane.f32.xlu0 %v510
  %v512 = vpop.xlane.xlu0 %511
  %v513 = vsel %vm494, %v488, -inf
  %514 = vmax.xlane.f32.xlu0 %v513
  %v515 = vpop.xlane.xlu0 %514
  %v516 = vsel %vm494, %v491, -inf
  %517 = vmax.xlane.f32.xlu0 %v516
  %v518 = vpop.xlane.xlu0 %517
  %v519 = vsub.f32 %v464, %v497
  %v520 = vsub.f32 %v467, %v500
  %v521 = vsub.f32 %v472, %v503
  %v522 = vsub.f32 %v475, %v506
  %v523 = vsub.f32 %v480, %v509
  %v524 = vsub.f32 %v483, %v512
  %v525 = vsub.f32 %v488, %v515
  %v526 = vsub.f32 %v491, %v518
  %v527 = vmul.f32 %v519, 1.442695
  %v528 = vpow.pop %v527
  %v529 = vmul.f32 %v520, 1.442695
  %v530 = vpow.pop %v529
  %v531 = vmul.f32 %v521, 1.442695
  %v532 = vpow.pop %v531
  %v533 = vmul.f32 %v522, 1.442695
  %v534 = vpow.pop %v533
  %v535 = vmul.f32 %v523, 1.442695
  %v536 = vpow.pop %v535
  %v537 = vmul.f32 %v524, 1.442695
  %v538 = vpow.pop %v537
  %v539 = vmul.f32 %v525, 1.442695
  %v540 = vpow.pop %v539
  %v541 = vmul.f32 %v526, 1.442695
  %v542 = vpow.pop %v541
  %v543 = vsel %vm494, %v528, 0.0
  %544 = vadd.xlane.f32.xlu0 %v543
  %v545 = vpop.xlane.xlu0 %544
  %v546 = vsel %vm494, %v530, 0.0
  %547 = vadd.xlane.f32.xlu0 %v546
  %v548 = vpop.xlane.xlu0 %547
  %v549 = vsel %vm494, %v532, 0.0
  %550 = vadd.xlane.f32.xlu0 %v549
  %v551 = vpop.xlane.xlu0 %550
  %v552 = vsel %vm494, %v534, 0.0
  %553 = vadd.xlane.f32.xlu0 %v552
  %v554 = vpop.xlane.xlu0 %553
  %v555 = vsel %vm494, %v536, 0.0
  %556 = vadd.xlane.f32.xlu0 %v555
  %v557 = vpop.xlane.xlu0 %556
  %v558 = vsel %vm494, %v538, 0.0
  %559 = vadd.xlane.f32.xlu0 %v558
  %v560 = vpop.xlane.xlu0 %559
  %v561 = vsel %vm494, %v540, 0.0
  %562 = vadd.xlane.f32.xlu0 %v561
  %v563 = vpop.xlane.xlu0 %562
  %v564 = vsel %vm494, %v542, 0.0
  %565 = vadd.xlane.f32.xlu0 %v564
  %v566 = vpop.xlane.xlu0 %565
  %v567 = vrcp.pop %v545
  %v568 = vrcp.pop %v548
  %v569 = vrcp.pop %v551
  %v570 = vrcp.pop %v554
  %v571 = vrcp.pop %v557
  %v572 = vrcp.pop %v560
  %v573 = vrcp.pop %v563
  %v574 = vrcp.pop %v566
  %v575 = vmul.f32 %v528, %v567
  %v576 = vmul.f32 %v530, %v568
  %v577 = vmul.f32 %v532, %v569
  %v578 = vmul.f32 %v534, %v570
  %v579 = vmul.f32 %v536, %v571
  %v580 = vmul.f32 %v538, %v572
  %v581 = vmul.f32 %v540, %v573
  %v582 = vmul.f32 %v542, %v574
  %v583 = vpack.c.bf16 %v576, %v575
  %v584 = vpack.c.bf16 %v578, %v577
  %v585 = vpack.c.bf16 %v580, %v579
  %v586 = vpack.c.bf16 %v582, %v581
  %588 = vrot.lane.b32.xlu0 %v373, 96
  %v589 = vpop.permute.xlu0 %588
  %v592 = vsel %vm494, %v584, 0
  %594 = vmatprep.subr.bf16.mxu0 0
  %595 = vmatpush1.bf16.msra.mxu0 0
  %596 = vmatprep.subr.bf16.mxu0 0
  %597 = vmatpush1.bf16.msra.mxu0 0
  %598 = vmatprep.subr.bf16.mxu0 0
  %599 = vmatpush1.bf16.msra.mxu0 0
  %600 = vmatprep.subr.bf16.mxu0 0
  %601 = vmatpush1.bf16.msra.mxu0 0
  %602 = vmatprep.subr.bf16.mxu0 0
  %603 = vmatpush1.bf16.msra.mxu0 0
  %604 = vmatprep.subr.bf16.mxu0 0
  %605 = vmatpush1.bf16.msra.mxu0 0
  %606 = vmatprep.subr.bf16.mxu0 0
  %607 = vmatpush1.bf16.msra.mxu0 0
  %608 = vmatprep.subr.bf16.mxu0 0
  %609 = vmatpush1.bf16.msra.mxu0 %v589
  %610 = vmatprep.subr.bf16.mxu0 0
  %611 = vmatpush2.bf16.msra.mxu0 0
  %612 = vmatprep.subr.bf16.mxu0 0
  %613 = vmatpush2.bf16.msra.mxu0 0
  %614 = vmatprep.subr.bf16.mxu0 0
  %615 = vmatpush2.bf16.msra.mxu0 0
  %616 = vmatprep.subr.bf16.mxu0 0
  %617 = vmatpush2.bf16.msra.mxu0 0
  %618 = vmatprep.subr.bf16.mxu0 0
  %619 = vmatpush2.bf16.msra.mxu0 0
  %620 = vmatprep.subr.bf16.mxu0 0
  %621 = vmatpush2.bf16.msra.mxu0 0
  %622 = vmatprep.subr.bf16.mxu0 0
  %623 = vmatpush2.bf16.msra.mxu0 0
  %624 = vmatprep.subr.bf16.mxu0 0
  %625 = vmatpush2.bf16.msra.mxu0 0
  %626 = vmatprep.mubr.bf16.mxu0 0
  %627 = vmatmul.mubr.bf16.gmra.mxu0 %v592
  %v628 = vpop.f32.mrf.mxu0
  %v629 = vadd.f32 0.0, %v628
  %v630 = vpop.f32.mrf.mxu0
  %v631 = vpop.f32.mrf.mxu0
  %v632 = vadd.f32 0.0, %v631
  %v633 = vpop.f32.mrf.mxu0
  %634 = vdwg.mxu0
  %v636 = vsel %vm494, %v583, 0
  %638 = vmatprep.subr.bf16.mxu0 0
  %639 = vmatpush1.bf16.msra.mxu0 0
  %640 = vmatprep.subr.bf16.mxu0 0
  %641 = vmatpush1.bf16.msra.mxu0 0
  %642 = vmatprep.subr.bf16.mxu0 0
  %643 = vmatpush1.bf16.msra.mxu0 0
  %644 = vmatprep.subr.bf16.mxu0 0
  %645 = vmatpush1.bf16.msra.mxu0 0
  %646 = vmatprep.subr.bf16.mxu0 0
  %647 = vmatpush1.bf16.msra.mxu0 0
  %648 = vmatprep.subr.bf16.mxu0 0
  %649 = vmatpush1.bf16.msra.mxu0 0
  %650 = vmatprep.subr.bf16.mxu0 0
  %651 = vmatpush1.bf16.msra.mxu0 0
  %652 = vmatprep.subr.bf16.mxu0 0
  %653 = vmatpush1.bf16.msra.mxu0 %v373
  %654 = vmatprep.subr.bf16.mxu0 0
  %655 = vmatpush2.bf16.msra.mxu0 0
  %656 = vmatprep.subr.bf16.mxu0 0
  %657 = vmatpush2.bf16.msra.mxu0 0
  %658 = vmatprep.subr.bf16.mxu0 0
  %659 = vmatpush2.bf16.msra.mxu0 0
  %660 = vmatprep.subr.bf16.mxu0 0
  %661 = vmatpush2.bf16.msra.mxu0 0
  %662 = vmatprep.subr.bf16.mxu0 0
  %663 = vmatpush2.bf16.msra.mxu0 0
  %664 = vmatprep.subr.bf16.mxu0 0
  %665 = vmatpush2.bf16.msra.mxu0 0
  %666 = vmatprep.subr.bf16.mxu0 0
  %667 = vmatpush2.bf16.msra.mxu0 0
  %668 = vmatprep.subr.bf16.mxu0 0
  %669 = vmatpush2.bf16.msra.mxu0 0
  %670 = vmatprep.mubr.bf16.mxu0 0
  %671 = vmatmul.mubr.bf16.gmra.mxu0 %v636
  %v672 = vpop.f32.mrf.mxu0
  %v673 = vadd.f32 %v629, %v672
  %v674 = vpop.f32.mrf.mxu0
  %v675 = vpop.f32.mrf.mxu0
  %v676 = vadd.f32 %v632, %v675
  %v677 = vpop.f32.mrf.mxu0
  %678 = vdwg.mxu0
  %679 = vrot.lane.b32.xlu0 %v373, 64
  %v680 = vpop.permute.xlu0 %679
  %v683 = vsel %vm494, %v585, 0
  %685 = vmatprep.subr.bf16.mxu0 0
  %686 = vmatpush1.bf16.msra.mxu0 0
  %687 = vmatprep.subr.bf16.mxu0 0
  %688 = vmatpush1.bf16.msra.mxu0 0
  %689 = vmatprep.subr.bf16.mxu0 0
  %690 = vmatpush1.bf16.msra.mxu0 0
  %691 = vmatprep.subr.bf16.mxu0 0
  %692 = vmatpush1.bf16.msra.mxu0 0
  %693 = vmatprep.subr.bf16.mxu0 0
  %694 = vmatpush1.bf16.msra.mxu0 0
  %695 = vmatprep.subr.bf16.mxu0 0
  %696 = vmatpush1.bf16.msra.mxu0 0
  %697 = vmatprep.subr.bf16.mxu0 0
  %698 = vmatpush1.bf16.msra.mxu0 0
  %699 = vmatprep.subr.bf16.mxu0 0
  %700 = vmatpush1.bf16.msra.mxu0 %v680
  %701 = vmatprep.subr.bf16.mxu0 0
  %702 = vmatpush2.bf16.msra.mxu0 0
  %703 = vmatprep.subr.bf16.mxu0 0
  %704 = vmatpush2.bf16.msra.mxu0 0
  %705 = vmatprep.subr.bf16.mxu0 0
  %706 = vmatpush2.bf16.msra.mxu0 0
  %707 = vmatprep.subr.bf16.mxu0 0
  %708 = vmatpush2.bf16.msra.mxu0 0
  %709 = vmatprep.subr.bf16.mxu0 0
  %710 = vmatpush2.bf16.msra.mxu0 0
  %711 = vmatprep.subr.bf16.mxu0 0
  %712 = vmatpush2.bf16.msra.mxu0 0
  %713 = vmatprep.subr.bf16.mxu0 0
  %714 = vmatpush2.bf16.msra.mxu0 0
  %715 = vmatprep.subr.bf16.mxu0 0
  %716 = vmatpush2.bf16.msra.mxu0 0
  %717 = vmatprep.mubr.bf16.mxu0 0
  %718 = vmatmul.mubr.bf16.gmra.mxu0 %v683
  %v719 = vpop.f32.mrf.mxu0
  %v720 = vadd.f32 0.0, %v719
  %v721 = vpop.f32.mrf.mxu0
  %v722 = vpop.f32.mrf.mxu0
  %v723 = vadd.f32 0.0, %v722
  %v724 = vpop.f32.mrf.mxu0
  %725 = vdwg.mxu0
  %v726 = vadd.f32 %v673, %v720
  %v727 = vadd.f32 %v676, %v723
  %728 = vrot.lane.b32.xlu0 %v373, 32
  %v729 = vpop.permute.xlu0 %728
  %v732 = vsel %vm494, %v586, 0
  %734 = vmatprep.subr.bf16.mxu0 0
  %735 = vmatpush1.bf16.msra.mxu0 0
  %736 = vmatprep.subr.bf16.mxu0 0
  %737 = vmatpush1.bf16.msra.mxu0 0
  %738 = vmatprep.subr.bf16.mxu0 0
  %739 = vmatpush1.bf16.msra.mxu0 0
  %740 = vmatprep.subr.bf16.mxu0 0
  %741 = vmatpush1.bf16.msra.mxu0 0
  %742 = vmatprep.subr.bf16.mxu0 0
  %743 = vmatpush1.bf16.msra.mxu0 0
  %744 = vmatprep.subr.bf16.mxu0 0
  %745 = vmatpush1.bf16.msra.mxu0 0
  %746 = vmatprep.subr.bf16.mxu0 0
  %747 = vmatpush1.bf16.msra.mxu0 0
  %748 = vmatprep.subr.bf16.mxu0 0
  %749 = vmatpush1.bf16.msra.mxu0 %v729
  %750 = vmatprep.subr.bf16.mxu0 0
  %751 = vmatpush2.bf16.msra.mxu0 0
  %752 = vmatprep.subr.bf16.mxu0 0
  %753 = vmatpush2.bf16.msra.mxu0 0
  %754 = vmatprep.subr.bf16.mxu0 0
  %755 = vmatpush2.bf16.msra.mxu0 0
  %756 = vmatprep.subr.bf16.mxu0 0
  %757 = vmatpush2.bf16.msra.mxu0 0
  %758 = vmatprep.subr.bf16.mxu0 0
  %759 = vmatpush2.bf16.msra.mxu0 0
  %760 = vmatprep.subr.bf16.mxu0 0
  %761 = vmatpush2.bf16.msra.mxu0 0
  %762 = vmatprep.subr.bf16.mxu0 0
  %763 = vmatpush2.bf16.msra.mxu0 0
  %764 = vmatprep.subr.bf16.mxu0 0
  %765 = vmatpush2.bf16.msra.mxu0 0
  %766 = vmatprep.mubr.bf16.mxu0 0
  %767 = vmatmul.mubr.bf16.gmra.mxu0 %v732
  %v768 = vpop.f32.mrf.mxu0
  %v769 = vadd.f32 0.0, %v768
  %v770 = vpop.f32.mrf.mxu0
  %v771 = vpop.f32.mrf.mxu0
  %v772 = vadd.f32 0.0, %v771
  %v773 = vpop.f32.mrf.mxu0
  %774 = vdwg.mxu0
  %v775 = vadd.f32 %v726, %v769
  %v776 = vadd.f32 %v727, %v772
  %v777 = vadd.f32 %v233, %v775
  %v778 = vadd.f32 %v234, %v776
  %v779 = vld [vmem:[%s11] sm:$0x1]
  %v781 = vlaneseq
  %v782 = vshrl.u32 %v781, 7
  %v783 = vsub.s32 0, %v782
  %v784 = vrot.slane %v779, %v783
  %v786 = vadd.f32 %v777, %v784
  %v787 = vadd.f32 %v778, %v784
  %v788 = vld [vmem:[%s12] sm:$0x1]
  %v789 = vld [vmem:[%s13] sm:$0x1]
  %v790 = vsel %vm191, %v786, 0.0
  %791 = vadd.xlane.f32.xlu0 %v790
  %v792 = vpop.xlane.xlu0 %791
  %v793 = vsel %vm191, %v787, 0.0
  %794 = vadd.xlane.f32.xlu0 %v793
  %v795 = vpop.xlane.xlu0 %794
  %v796 = vmul.f32 %v792, %v198
  %v797 = vmul.f32 %v795, %v198
  %v798 = vsub.f32 %v786, %v796
  %v799 = vsub.f32 %v787, %v797
  %v800 = vmul.f32 %v798, %v798
  %v801 = vmul.f32 %v799, %v799
  %v802 = vsel %vm191, %v800, 0.0
  %803 = vadd.xlane.f32.xlu0 %v802
  %v804 = vpop.xlane.xlu0 %803
  %v805 = vsel %vm191, %v801, 0.0
  %806 = vadd.xlane.f32.xlu0 %v805
  %v807 = vpop.xlane.xlu0 %806
  %v808 = vmul.f32 %v804, %v198
  %v809 = vmul.f32 %v807, %v198
  %v810 = vadd.f32 %v808, 1e-12
  %v811 = vadd.f32 %v809, 1e-12
  %v812 = vrsqrt.pop %v810
  %v813 = vrsqrt.pop %v811
  %v814 = vmul.f32 %v798, %v812
  %v815 = vmul.f32 %v799, %v813
  %v817 = vlaneseq
  %v818 = vshrl.u32 %v817, 7
  %v819 = vsub.s32 0, %v818
  %v820 = vrot.slane %v788, %v819
  %v822 = vmul.f32 %v814, %v820
  %v823 = vmul.f32 %v815, %v820
  %v825 = vlaneseq
  %v826 = vshrl.u32 %v825, 7
  %v827 = vsub.s32 0, %v826
  %v828 = vrot.slane %v789, %v827
  %v830 = vadd.f32 %v822, %v828
  %v831 = vadd.f32 %v823, %v828
  %v832 = vpack.c.bf16 %v831, %v830
  %v833 = vld [vmem:[%s14] sm:$0xf]
  %v834 = vld [vmem:[%s14 + $0x4] sm:$0xf]
  %v835 = vld [vmem:[%s14 + $0x8] sm:$0xf]
  %v836 = vld [vmem:[%s14 + $0xc] sm:$0xf]
  %v837 = vld [vmem:[%s15] sm:$0x1]
  %v839 = vlaneseq
  %v840 = vshrl.u32 %v839, 7
  %v841 = vsub.s32 0, %v840
  %v842 = vrot.slane %v837, %v841
  %v848 = vunpack.c.l.b16 %v833
  %v849 = vunpack.c.l.b16 %v834
  %v850 = vunpack.c.l.b16 %v835
  %v851 = vunpack.c.l.b16 %v836
  %v852 = vpack.c.b16 %v849, %v848
  %v853 = vpack.c.b16 %v851, %v850
  %v857 = vsel %vm191, %v832, 0
  %859 = vmatprep.subr.bf16.mxu0 0
  %860 = vmatpush1.bf16.msra.mxu0 0
  %861 = vmatprep.subr.bf16.mxu0 0
  %862 = vmatpush1.bf16.msra.mxu0 0
  %863 = vmatprep.subr.bf16.mxu0 0
  %864 = vmatpush1.bf16.msra.mxu0 0
  %865 = vmatprep.subr.bf16.mxu0 0
  %866 = vmatpush1.bf16.msra.mxu0 0
  %867 = vmatprep.subr.bf16.mxu0 0
  %868 = vmatpush1.bf16.msra.mxu0 0
  %869 = vmatprep.subr.bf16.mxu0 0
  %870 = vmatpush1.bf16.msra.mxu0 0
  %871 = vmatprep.subr.bf16.mxu0 0
  %872 = vmatpush1.bf16.msra.mxu0 %v853
  %873 = vmatprep.subr.bf16.mxu0 0
  %874 = vmatpush1.bf16.msra.mxu0 %v852
  %875 = vmatprep.subr.bf16.mxu0 0
  %876 = vmatpush2.bf16.msra.mxu0 0
  %877 = vmatprep.subr.bf16.mxu0 0
  %878 = vmatpush2.bf16.msra.mxu0 0
  %879 = vmatprep.subr.bf16.mxu0 0
  %880 = vmatpush2.bf16.msra.mxu0 0
  %881 = vmatprep.subr.bf16.mxu0 0
  %882 = vmatpush2.bf16.msra.mxu0 0
  %883 = vmatprep.subr.bf16.mxu0 0
  %884 = vmatpush2.bf16.msra.mxu0 0
  %885 = vmatprep.subr.bf16.mxu0 0
  %886 = vmatpush2.bf16.msra.mxu0 0
  %887 = vmatprep.subr.bf16.mxu0 0
  %888 = vmatpush2.bf16.msra.mxu0 0
  %889 = vmatprep.subr.bf16.mxu0 0
  %890 = vmatpush2.bf16.msra.mxu0 0
  %891 = vmatprep.mubr.bf16.mxu0 0
  %892 = vmatmul.mubr.bf16.gmra.mxu0 %v857
  %v893 = vpop.f32.mrf.mxu0
  %v894 = vadd.f32 %v842, %v893
  %v895 = vpop.f32.mrf.mxu0
  %v896 = vpop.f32.mrf.mxu0
  %v897 = vadd.f32 %v842, %v896
  %v898 = vpop.f32.mrf.mxu0
  %899 = vdwg.mxu0
  %v900 = vmul.f32 %v894, 0.5
  %v901 = vmul.f32 %v897, 0.5
  %v902 = vmul.f32 %v894, 0.044715
  %v903 = vmul.f32 %v897, 0.044715
  %v904 = vmul.f32 %v902, %v894
  %v905 = vmul.f32 %v903, %v897
  %v906 = vmul.f32 %v904, %v894
  %v907 = vmul.f32 %v905, %v897
  %v908 = vadd.f32 %v894, %v906
  %v909 = vadd.f32 %v897, %v907
  %v910 = vmul.f32 %v908, 0.7978846
  %v911 = vmul.f32 %v909, 0.7978846
  %v912 = vtanh.pop %v910
  %v913 = vtanh.pop %v911
  %v914 = vadd.f32 %v912, 1.0
  %v915 = vadd.f32 %v913, 1.0
  %v916 = vmul.f32 %v900, %v914
  %v917 = vmul.f32 %v901, %v915
  %v918 = vpack.c.bf16 %v917, %v916
  %v919 = vld [vmem:[%s16] sm:$0xf]
  %v920 = vld [vmem:[%s16 + $0x4] sm:$0xf]
  %v921 = vld [vmem:[%s16 + $0x8] sm:$0xf]
  %v922 = vld [vmem:[%s16 + $0xc] sm:$0xf]
  %v923 = vld [vmem:[%s16 + $0x10] sm:$0xf]
  %v924 = vld [vmem:[%s16 + $0x14] sm:$0xf]
  %v925 = vld [vmem:[%s16 + $0x18] sm:$0xf]
  %v926 = vld [vmem:[%s16 + $0x1c] sm:$0xf]
  %v927 = vld [vmem:[%s17] sm:$0x1]
  %v929 = vlaneseq
  %v930 = vshrl.u32 %v929, 7
  %v931 = vsub.s32 0, %v930
  %v932 = vrot.slane %v927, %v931
  %v942 = vunpack.c.l.b16 %v919
  %v943 = vunpack.c.l.b16 %v920
  %v944 = vunpack.c.l.b16 %v921
  %v945 = vunpack.c.l.b16 %v922
  %v946 = vunpack.c.l.b16 %v923
  %v947 = vunpack.c.l.b16 %v924
  %v948 = vunpack.c.l.b16 %v925
  %v949 = vunpack.c.l.b16 %v926
  %v950 = vpack.c.b16 %v943, %v942
  %v951 = vpack.c.b16 %v945, %v944
  %v952 = vpack.c.b16 %v947, %v946
  %v953 = vpack.c.b16 %v949, %v948
  %vm958 = vcmask 523264
  %v960 = vsel %vm958, %v918, 0
  %962 = vmatprep.subr.bf16.mxu0 0
  %963 = vmatpush1.bf16.msra.mxu0 0
  %964 = vmatprep.subr.bf16.mxu0 0
  %965 = vmatpush1.bf16.msra.mxu0 0
  %966 = vmatprep.subr.bf16.mxu0 0
  %967 = vmatpush1.bf16.msra.mxu0 0
  %968 = vmatprep.subr.bf16.mxu0 0
  %969 = vmatpush1.bf16.msra.mxu0 0
  %970 = vmatprep.subr.bf16.mxu0 0
  %971 = vmatpush1.bf16.msra.mxu0 %v953
  %972 = vmatprep.subr.bf16.mxu0 0
  %973 = vmatpush1.bf16.msra.mxu0 %v952
  %974 = vmatprep.subr.bf16.mxu0 0
  %975 = vmatpush1.bf16.msra.mxu0 %v951
  %976 = vmatprep.subr.bf16.mxu0 0
  %977 = vmatpush1.bf16.msra.mxu0 %v950
  %978 = vmatprep.subr.bf16.mxu0 0
  %979 = vmatpush2.bf16.msra.mxu0 0
  %980 = vmatprep.subr.bf16.mxu0 0
  %981 = vmatpush2.bf16.msra.mxu0 0
  %982 = vmatprep.subr.bf16.mxu0 0
  %983 = vmatpush2.bf16.msra.mxu0 0
  %984 = vmatprep.subr.bf16.mxu0 0
  %985 = vmatpush2.bf16.msra.mxu0 0
  %986 = vmatprep.subr.bf16.mxu0 0
  %987 = vmatpush2.bf16.msra.mxu0 0
  %988 = vmatprep.subr.bf16.mxu0 0
  %989 = vmatpush2.bf16.msra.mxu0 0
  %990 = vmatprep.subr.bf16.mxu0 0
  %991 = vmatpush2.bf16.msra.mxu0 0
  %992 = vmatprep.subr.bf16.mxu0 0
  %993 = vmatpush2.bf16.msra.mxu0 0
  %994 = vmatprep.mubr.bf16.mxu0 0
  %995 = vmatmul.mubr.bf16.gmra.mxu0 %v960
  %v996 = vpop.f32.mrf.mxu0
  %v997 = vadd.f32 %v932, %v996
  %v998 = vpop.f32.mrf.mxu0
  %v999 = vpop.f32.mrf.mxu0
  %v1000 = vadd.f32 %v932, %v999
  %v1001 = vpop.f32.mrf.mxu0
  %1002 = vdwg.mxu0
  %v1003 = vadd.f32 %v830, %v997
  %v1004 = vadd.f32 %v831, %v1000
  %v1005 = vld [vmem:[%s18] sm:$0x1]
  %v1006 = vld [vmem:[%s19] sm:$0x1]
  %v1007 = vsel %vm191, %v1003, 0.0
  %1008 = vadd.xlane.f32.xlu0 %v1007
  %v1009 = vpop.xlane.xlu0 %1008
  %v1010 = vsel %vm191, %v1004, 0.0
  %1011 = vadd.xlane.f32.xlu0 %v1010
  %v1012 = vpop.xlane.xlu0 %1011
  %v1013 = vmul.f32 %v1009, %v198
  %v1014 = vmul.f32 %v1012, %v198
  %v1015 = vsub.f32 %v1003, %v1013
  %v1016 = vsub.f32 %v1004, %v1014
  %v1017 = vmul.f32 %v1015, %v1015
  %v1018 = vmul.f32 %v1016, %v1016
  %v1019 = vsel %vm191, %v1017, 0.0
  %1020 = vadd.xlane.f32.xlu0 %v1019
  %v1021 = vpop.xlane.xlu0 %1020
  %v1022 = vsel %vm191, %v1018, 0.0
  %1023 = vadd.xlane.f32.xlu0 %v1022
  %v1024 = vpop.xlane.xlu0 %1023
  %v1025 = vmul.f32 %v1021, %v198
  %v1026 = vmul.f32 %v1024, %v198
  %v1027 = vadd.f32 %v1025, 1e-12
  %v1028 = vadd.f32 %v1026, 1e-12
  %v1029 = vrsqrt.pop %v1027
  %v1030 = vrsqrt.pop %v1028
  %v1031 = vmul.f32 %v1015, %v1029
  %v1032 = vmul.f32 %v1016, %v1030
  %v1034 = vlaneseq
  %v1035 = vshrl.u32 %v1034, 7
  %v1036 = vsub.s32 0, %v1035
  %v1037 = vrot.slane %v1005, %v1036
  %v1039 = vmul.f32 %v1031, %v1037
  %v1040 = vmul.f32 %v1032, %v1037
  %v1042 = vlaneseq
  %v1043 = vshrl.u32 %v1042, 7
  %v1044 = vsub.s32 0, %v1043
  %v1045 = vrot.slane %v1006, %v1044
  %v1047 = vadd.f32 %v1039, %v1045
  %v1048 = vadd.f32 %v1040, %v1045
  %v1049 = vpack.c.bf16 %v1048, %v1047
  %s1050 = scalar_lea.vmem %s7, 16
  %v1051 = vld [vmem:[%s1050] sm:$0xf]
  %v1052 = vld [vmem:[%s1050 + $0x4] sm:$0xf]
  %v1053 = vld [vmem:[%s1050 + $0x8] sm:$0xf]
  %v1054 = vld [vmem:[%s1050 + $0xc] sm:$0xf]
  %s1055 = scalar_lea.vmem %s8, 1
  %v1056 = vld [vmem:[%s1055] sm:$0x1]
  %v1058 = vlaneseq
  %v1059 = vshrl.u32 %v1058, 7
  %v1060 = vsub.s32 0, %v1059
  %v1061 = vrot.slane %v1056, %v1060
  %v1067 = vunpack.c.l.b16 %v1051
  %v1068 = vunpack.c.l.b16 %v1052
  %v1069 = vunpack.c.l.b16 %v1053
  %v1070 = vunpack.c.l.b16 %v1054
  %v1071 = vpack.c.b16 %v1068, %v1067
  %v1072 = vpack.c.b16 %v1070, %v1069
  %v1076 = vsel %vm191, %v1049, 0
  %1078 = vmatprep.subr.bf16.mxu0 0
  %1079 = vmatpush1.bf16.msra.mxu0 0
  %1080 = vmatprep.subr.bf16.mxu0 0
  %1081 = vmatpush1.bf16.msra.mxu0 0
  %1082 = vmatprep.subr.bf16.mxu0 0
  %1083 = vmatpush1.bf16.msra.mxu0 0
  %1084 = vmatprep.subr.bf16.mxu0 0
  %1085 = vmatpush1.bf16.msra.mxu0 0
  %1086 = vmatprep.subr.bf16.mxu0 0
  %1087 = vmatpush1.bf16.msra.mxu0 0
  %1088 = vmatprep.subr.bf16.mxu0 0
  %1089 = vmatpush1.bf16.msra.mxu0 0
  %1090 = vmatprep.subr.bf16.mxu0 0
  %1091 = vmatpush1.bf16.msra.mxu0 %v1072
  %1092 = vmatprep.subr.bf16.mxu0 0
  %1093 = vmatpush1.bf16.msra.mxu0 %v1071
  %1094 = vmatprep.subr.bf16.mxu0 0
  %1095 = vmatpush2.bf16.msra.mxu0 0
  %1096 = vmatprep.subr.bf16.mxu0 0
  %1097 = vmatpush2.bf16.msra.mxu0 0
  %1098 = vmatprep.subr.bf16.mxu0 0
  %1099 = vmatpush2.bf16.msra.mxu0 0
  %1100 = vmatprep.subr.bf16.mxu0 0
  %1101 = vmatpush2.bf16.msra.mxu0 0
  %1102 = vmatprep.subr.bf16.mxu0 0
  %1103 = vmatpush2.bf16.msra.mxu0 0
  %1104 = vmatprep.subr.bf16.mxu0 0
  %1105 = vmatpush2.bf16.msra.mxu0 0
  %1106 = vmatprep.subr.bf16.mxu0 0
  %1107 = vmatpush2.bf16.msra.mxu0 0
  %1108 = vmatprep.subr.bf16.mxu0 0
  %1109 = vmatpush2.bf16.msra.mxu0 0
  %1110 = vmatprep.mubr.bf16.mxu0 0
  %1111 = vmatmul.mubr.bf16.gmra.mxu0 %v1076
  %v1112 = vpop.f32.mrf.mxu0
  %v1113 = vadd.f32 %v1061, %v1112
  %v1114 = vpop.f32.mrf.mxu0
  %v1115 = vpop.f32.mrf.mxu0
  %v1116 = vadd.f32 %v1061, %v1115
  %v1117 = vpop.f32.mrf.mxu0
  %1118 = vdwg.mxu0
  %s1119 = scalar_lea.vmem %s9, 16
  %v1120 = vld [vmem:[%s1119] sm:$0xf]
  %v1121 = vld [vmem:[%s1119 + $0x4] sm:$0xf]
  %v1122 = vld [vmem:[%s1119 + $0x8] sm:$0xf]
  %v1123 = vld [vmem:[%s1119 + $0xc] sm:$0xf]
  %s1124 = scalar_lea.vmem %s10, 1
  %v1125 = vld [vmem:[%s1124] sm:$0x1]
  %v1127 = vlaneseq
  %v1128 = vshrl.u32 %v1127, 7
  %v1129 = vsub.s32 0, %v1128
  %v1130 = vrot.slane %v1125, %v1129
  %v1136 = vunpack.c.l.b16 %v1120
  %v1137 = vunpack.c.l.b16 %v1121
  %v1138 = vunpack.c.l.b16 %v1122
  %v1139 = vunpack.c.l.b16 %v1123
  %v1140 = vpack.c.b16 %v1137, %v1136
  %v1141 = vpack.c.b16 %v1139, %v1138
  %1144 = vmatprep.subr.bf16.mxu0 0
  %1145 = vmatpush1.bf16.msra.mxu0 0
  %1146 = vmatprep.subr.bf16.mxu0 0
  %1147 = vmatpush1.bf16.msra.mxu0 0
  %1148 = vmatprep.subr.bf16.mxu0 0
  %1149 = vmatpush1.bf16.msra.mxu0 0
  %1150 = vmatprep.subr.bf16.mxu0 0
  %1151 = vmatpush1.bf16.msra.mxu0 0
  %1152 = vmatprep.subr.bf16.mxu0 0
  %1153 = vmatpush1.bf16.msra.mxu0 0
  %1154 = vmatprep.subr.bf16.mxu0 0
  %1155 = vmatpush1.bf16.msra.mxu0 0
  %1156 = vmatprep.subr.bf16.mxu0 0
  %1157 = vmatpush1.bf16.msra.mxu0 %v1141
  %1158 = vmatprep.subr.bf16.mxu0 0
  %1159 = vmatpush1.bf16.msra.mxu0 %v1140
  %1160 = vmatprep.subr.bf16.mxu0 0
  %1161 = vmatpush2.bf16.msra.mxu0 0
  %1162 = vmatprep.subr.bf16.mxu0 0
  %1163 = vmatpush2.bf16.msra.mxu0 0
  %1164 = vmatprep.subr.bf16.mxu0 0
  %1165 = vmatpush2.bf16.msra.mxu0 0
  %1166 = vmatprep.subr.bf16.mxu0 0
  %1167 = vmatpush2.bf16.msra.mxu0 0
  %1168 = vmatprep.subr.bf16.mxu0 0
  %1169 = vmatpush2.bf16.msra.mxu0 0
  %1170 = vmatprep.subr.bf16.mxu0 0
  %1171 = vmatpush2.bf16.msra.mxu0 0
  %1172 = vmatprep.subr.bf16.mxu0 0
  %1173 = vmatpush2.bf16.msra.mxu0 0
  %1174 = vmatprep.subr.bf16.mxu0 0
  %1175 = vmatpush2.bf16.msra.mxu0 0
  %1176 = vmatprep.mubr.bf16.mxu0 0
  %1177 = vmatmul.mubr.bf16.gmra.mxu0 %v1076
  %v1178 = vpop.f32.mrf.mxu0
  %v1179 = vadd.f32 %v1130, %v1178
  %v1180 = vpop.f32.mrf.mxu0
  %v1181 = vpop.f32.mrf.mxu0
  %v1182 = vadd.f32 %v1130, %v1181
  %v1183 = vpop.f32.mrf.mxu0
  %1184 = vdwg.mxu0
  %v1185 = vpack.c.bf16 %v1182, %v1179
  %v1186 = vmul.f32 %v1113, %v381
  %v1187 = vmul.f32 %v1116, %v381
  %v1188 = vmul.f32 %v1113, %v385
  %v1189 = vmul.f32 %v1116, %v385
  %v1190 = vmul.f32 %v1113, %v389
  %v1191 = vmul.f32 %v1116, %v389
  %v1192 = vmul.f32 %v1113, %v393
  %v1193 = vmul.f32 %v1116, %v393
  %v1194 = vpack.c.bf16 %v1187, %v1186
  %v1195 = vpack.c.bf16 %v1189, %v1188
  %v1196 = vpack.c.bf16 %v1191, %v1190
  %v1197 = vpack.c.bf16 %v1193, %v1192
  %v1198 = vpack.c.bf16 %v1116, %v1113
  %1200 = vrot.lane.b32.xlu0 %v1198, 96
  %v1201 = vpop.permute.xlu0 %1200
  %v1203 = vsel %vm191, %v1194, 0
  %v1206 = vsel %vm191, %v1195, 0
  %v1209 = vsel %vm191, %v1196, 0
  %v1212 = vsel %vm191, %v1197, 0
  %v1215 = vsel %vm191, %v1201, 0
  %1217 = vmatprep.subr.bf16.mxu0 0
  %1218 = vmatpush1.bf16.xpose.msra.mxu0 0
  %1219 = vmatprep.subr.bf16.mxu0 0
  %1220 = vmatpush1.bf16.xpose.msra.mxu0 0
  %1221 = vmatprep.subr.bf16.mxu0 0
  %1222 = vmatpush1.bf16.xpose.msra.mxu0 0
  %1223 = vmatprep.subr.bf16.mxu0 0
  %1224 = vmatpush1.bf16.xpose.msra.mxu0 0
  %1225 = vmatprep.subr.bf16.mxu0 0
  %1226 = vmatpush1.bf16.xpose.msra.mxu0 0
  %1227 = vmatprep.subr.bf16.mxu0 0
  %1228 = vmatpush1.bf16.xpose.msra.mxu0 0
  %1229 = vmatprep.subr.bf16.mxu0 0
  %1230 = vmatpush1.bf16.xpose.msra.mxu0 0
  %1231 = vmatprep.subr.bf16.mxu0 0
  %1232 = vmatpush1.bf16.xpose.msra.mxu0 %v1215
  %1233 = vmatprep.subr.bf16.mxu0 0
  %1234 = vmatpush2.bf16.xpose.msra.mxu0 0
  %1235 = vmatprep.subr.bf16.mxu0 0
  %1236 = vmatpush2.bf16.xpose.msra.mxu0 0
  %1237 = vmatprep.subr.bf16.mxu0 0
  %1238 = vmatpush2.bf16.xpose.msra.mxu0 0
  %1239 = vmatprep.subr.bf16.mxu0 0
  %1240 = vmatpush2.bf16.xpose.msra.mxu0 0
  %1241 = vmatprep.subr.bf16.mxu0 0
  %1242 = vmatpush2.bf16.xpose.msra.mxu0 0
  %1243 = vmatprep.subr.bf16.mxu0 0
  %1244 = vmatpush2.bf16.xpose.msra.mxu0 0
  %1245 = vmatprep.subr.bf16.mxu0 0
  %1246 = vmatpush2.bf16.xpose.msra.mxu0 0
  %1247 = vmatprep.subr.bf16.mxu0 0
  %1248 = vmatpush2.bf16.xpose.msra.mxu0 0
  %1249 = vmatprep.mubr.bf16.mxu0 0
  %1250 = vmatmul.mubr.bf16.gmra.mxu0 %v1203
  %v1251 = vpop.f32.mrf.mxu0
  %v1252 = vadd.f32 %v235, %v1251
  %v1253 = vpop.f32.mrf.mxu0
  %v1254 = vpop.f32.mrf.mxu0
  %v1255 = vadd.f32 %v236, %v1254
  %v1256 = vpop.f32.mrf.mxu0
  %1257 = vmatprep.mubr.bf16.mxu0 0
  %1258 = vmatmul.mubr.bf16.gmra.mxu0 %v1206
  %v1259 = vpop.f32.mrf.mxu0
  %v1260 = vadd.f32 %v235, %v1259
  %v1261 = vpop.f32.mrf.mxu0
  %v1262 = vpop.f32.mrf.mxu0
  %v1263 = vadd.f32 %v236, %v1262
  %v1264 = vpop.f32.mrf.mxu0
  %1265 = vmatprep.mubr.bf16.mxu0 0
  %1266 = vmatmul.mubr.bf16.gmra.mxu0 %v1209
  %v1267 = vpop.f32.mrf.mxu0
  %v1268 = vadd.f32 %v235, %v1267
  %v1269 = vpop.f32.mrf.mxu0
  %v1270 = vpop.f32.mrf.mxu0
  %v1271 = vadd.f32 %v236, %v1270
  %v1272 = vpop.f32.mrf.mxu0
  %1273 = vmatprep.mubr.bf16.mxu0 0
  %1274 = vmatmul.mubr.bf16.gmra.mxu0 %v1212
  %v1275 = vpop.f32.mrf.mxu0
  %v1276 = vadd.f32 %v235, %v1275
  %v1277 = vpop.f32.mrf.mxu0
  %v1278 = vpop.f32.mrf.mxu0
  %v1279 = vadd.f32 %v236, %v1278
  %v1280 = vpop.f32.mrf.mxu0
  %1281 = vdwg.mxu0
  %v1282 = vsel %vm494, %v1252, -inf
  %1283 = vmax.xlane.f32.xlu0 %v1282
  %v1284 = vpop.xlane.xlu0 %1283
  %v1285 = vsel %vm494, %v1255, -inf
  %1286 = vmax.xlane.f32.xlu0 %v1285
  %v1287 = vpop.xlane.xlu0 %1286
  %v1288 = vsel %vm494, %v1260, -inf
  %1289 = vmax.xlane.f32.xlu0 %v1288
  %v1290 = vpop.xlane.xlu0 %1289
  %v1291 = vsel %vm494, %v1263, -inf
  %1292 = vmax.xlane.f32.xlu0 %v1291
  %v1293 = vpop.xlane.xlu0 %1292
  %v1294 = vsel %vm494, %v1268, -inf
  %1295 = vmax.xlane.f32.xlu0 %v1294
  %v1296 = vpop.xlane.xlu0 %1295
  %v1297 = vsel %vm494, %v1271, -inf
  %1298 = vmax.xlane.f32.xlu0 %v1297
  %v1299 = vpop.xlane.xlu0 %1298
  %v1300 = vsel %vm494, %v1276, -inf
  %1301 = vmax.xlane.f32.xlu0 %v1300
  %v1302 = vpop.xlane.xlu0 %1301
  %v1303 = vsel %vm494, %v1279, -inf
  %1304 = vmax.xlane.f32.xlu0 %v1303
  %v1305 = vpop.xlane.xlu0 %1304
  %v1306 = vsub.f32 %v1252, %v1284
  %v1307 = vsub.f32 %v1255, %v1287
  %v1308 = vsub.f32 %v1260, %v1290
  %v1309 = vsub.f32 %v1263, %v1293
  %v1310 = vsub.f32 %v1268, %v1296
  %v1311 = vsub.f32 %v1271, %v1299
  %v1312 = vsub.f32 %v1276, %v1302
  %v1313 = vsub.f32 %v1279, %v1305
  %v1314 = vmul.f32 %v1306, 1.442695
  %v1315 = vpow.pop %v1314
  %v1316 = vmul.f32 %v1307, 1.442695
  %v1317 = vpow.pop %v1316
  %v1318 = vmul.f32 %v1308, 1.442695
  %v1319 = vpow.pop %v1318
  %v1320 = vmul.f32 %v1309, 1.442695
  %v1321 = vpow.pop %v1320
  %v1322 = vmul.f32 %v1310, 1.442695
  %v1323 = vpow.pop %v1322
  %v1324 = vmul.f32 %v1311, 1.442695
  %v1325 = vpow.pop %v1324
  %v1326 = vmul.f32 %v1312, 1.442695
  %v1327 = vpow.pop %v1326
  %v1328 = vmul.f32 %v1313, 1.442695
  %v1329 = vpow.pop %v1328
  %v1330 = vsel %vm494, %v1315, 0.0
  %1331 = vadd.xlane.f32.xlu0 %v1330
  %v1332 = vpop.xlane.xlu0 %1331
  %v1333 = vsel %vm494, %v1317, 0.0
  %1334 = vadd.xlane.f32.xlu0 %v1333
  %v1335 = vpop.xlane.xlu0 %1334
  %v1336 = vsel %vm494, %v1319, 0.0
  %1337 = vadd.xlane.f32.xlu0 %v1336
  %v1338 = vpop.xlane.xlu0 %1337
  %v1339 = vsel %vm494, %v1321, 0.0
  %1340 = vadd.xlane.f32.xlu0 %v1339
  %v1341 = vpop.xlane.xlu0 %1340
  %v1342 = vsel %vm494, %v1323, 0.0
  %1343 = vadd.xlane.f32.xlu0 %v1342
  %v1344 = vpop.xlane.xlu0 %1343
  %v1345 = vsel %vm494, %v1325, 0.0
  %1346 = vadd.xlane.f32.xlu0 %v1345
  %v1347 = vpop.xlane.xlu0 %1346
  %v1348 = vsel %vm494, %v1327, 0.0
  %1349 = vadd.xlane.f32.xlu0 %v1348
  %v1350 = vpop.xlane.xlu0 %1349
  %v1351 = vsel %vm494, %v1329, 0.0
  %1352 = vadd.xlane.f32.xlu0 %v1351
  %v1353 = vpop.xlane.xlu0 %1352
  %v1354 = vrcp.pop %v1332
  %v1355 = vrcp.pop %v1335
  %v1356 = vrcp.pop %v1338
  %v1357 = vrcp.pop %v1341
  %v1358 = vrcp.pop %v1344
  %v1359 = vrcp.pop %v1347
  %v1360 = vrcp.pop %v1350
  %v1361 = vrcp.pop %v1353
  %v1362 = vmul.f32 %v1315, %v1354
  %v1363 = vmul.f32 %v1317, %v1355
  %v1364 = vmul.f32 %v1319, %v1356
  %v1365 = vmul.f32 %v1321, %v1357
  %v1366 = vmul.f32 %v1323, %v1358
  %v1367 = vmul.f32 %v1325, %v1359
  %v1368 = vmul.f32 %v1327, %v1360
  %v1369 = vmul.f32 %v1329, %v1361
  %v1370 = vpack.c.bf16 %v1363, %v1362
  %v1371 = vpack.c.bf16 %v1365, %v1364
  %v1372 = vpack.c.bf16 %v1367, %v1366
  %v1373 = vpack.c.bf16 %v1369, %v1368
  %1375 = vrot.lane.b32.xlu0 %v1185, 96
  %v1376 = vpop.permute.xlu0 %1375
  %v1379 = vsel %vm494, %v1371, 0
  %1381 = vmatprep.subr.bf16.mxu0 0
  %1382 = vmatpush1.bf16.msra.mxu0 0
  %1383 = vmatprep.subr.bf16.mxu0 0
  %1384 = vmatpush1.bf16.msra.mxu0 0
  %1385 = vmatprep.subr.bf16.mxu0 0
  %1386 = vmatpush1.bf16.msra.mxu0 0
  %1387 = vmatprep.subr.bf16.mxu0 0
  %1388 = vmatpush1.bf16.msra.mxu0 0
  %1389 = vmatprep.subr.bf16.mxu0 0
  %1390 = vmatpush1.bf16.msra.mxu0 0
  %1391 = vmatprep.subr.bf16.mxu0 0
  %1392 = vmatpush1.bf16.msra.mxu0 0
  %1393 = vmatprep.subr.bf16.mxu0 0
  %1394 = vmatpush1.bf16.msra.mxu0 0
  %1395 = vmatprep.subr.bf16.mxu0 0
  %1396 = vmatpush1.bf16.msra.mxu0 %v1376
  %1397 = vmatprep.subr.bf16.mxu0 0
  %1398 = vmatpush2.bf16.msra.mxu0 0
  %1399 = vmatprep.subr.bf16.mxu0 0
  %1400 = vmatpush2.bf16.msra.mxu0 0
  %1401 = vmatprep.subr.bf16.mxu0 0
  %1402 = vmatpush2.bf16.msra.mxu0 0
  %1403 = vmatprep.subr.bf16.mxu0 0
  %1404 = vmatpush2.bf16.msra.mxu0 0
  %1405 = vmatprep.subr.bf16.mxu0 0
  %1406 = vmatpush2.bf16.msra.mxu0 0
  %1407 = vmatprep.subr.bf16.mxu0 0
  %1408 = vmatpush2.bf16.msra.mxu0 0
  %1409 = vmatprep.subr.bf16.mxu0 0
  %1410 = vmatpush2.bf16.msra.mxu0 0
  %1411 = vmatprep.subr.bf16.mxu0 0
  %1412 = vmatpush2.bf16.msra.mxu0 0
  %1413 = vmatprep.mubr.bf16.mxu0 0
  %1414 = vmatmul.mubr.bf16.gmra.mxu0 %v1379
  %v1415 = vpop.f32.mrf.mxu0
  %v1416 = vadd.f32 0.0, %v1415
  %v1417 = vpop.f32.mrf.mxu0
  %v1418 = vpop.f32.mrf.mxu0
  %v1419 = vadd.f32 0.0, %v1418
  %v1420 = vpop.f32.mrf.mxu0
  %1421 = vdwg.mxu0
  %v1423 = vsel %vm494, %v1370, 0
  %1425 = vmatprep.subr.bf16.mxu0 0
  %1426 = vmatpush1.bf16.msra.mxu0 0
  %1427 = vmatprep.subr.bf16.mxu0 0
  %1428 = vmatpush1.bf16.msra.mxu0 0
  %1429 = vmatprep.subr.bf16.mxu0 0
  %1430 = vmatpush1.bf16.msra.mxu0 0
  %1431 = vmatprep.subr.bf16.mxu0 0
  %1432 = vmatpush1.bf16.msra.mxu0 0
  %1433 = vmatprep.subr.bf16.mxu0 0
  %1434 = vmatpush1.bf16.msra.mxu0 0
  %1435 = vmatprep.subr.bf16.mxu0 0
  %1436 = vmatpush1.bf16.msra.mxu0 0
  %1437 = vmatprep.subr.bf16.mxu0 0
  %1438 = vmatpush1.bf16.msra.mxu0 0
  %1439 = vmatprep.subr.bf16.mxu0 0
  %1440 = vmatpush1.bf16.msra.mxu0 %v1185
  %1441 = vmatprep.subr.bf16.mxu0 0
  %1442 = vmatpush2.bf16.msra.mxu0 0
  %1443 = vmatprep.subr.bf16.mxu0 0
  %1444 = vmatpush2.bf16.msra.mxu0 0
  %1445 = vmatprep.subr.bf16.mxu0 0
  %1446 = vmatpush2.bf16.msra.mxu0 0
  %1447 = vmatprep.subr.bf16.mxu0 0
  %1448 = vmatpush2.bf16.msra.mxu0 0
  %1449 = vmatprep.subr.bf16.mxu0 0
  %1450 = vmatpush2.bf16.msra.mxu0 0
  %1451 = vmatprep.subr.bf16.mxu0 0
  %1452 = vmatpush2.bf16.msra.mxu0 0
  %1453 = vmatprep.subr.bf16.mxu0 0
  %1454 = vmatpush2.bf16.msra.mxu0 0
  %1455 = vmatprep.subr.bf16.mxu0 0
  %1456 = vmatpush2.bf16.msra.mxu0 0
  %1457 = vmatprep.mubr.bf16.mxu0 0
  %1458 = vmatmul.mubr.bf16.gmra.mxu0 %v1423
  %v1459 = vpop.f32.mrf.mxu0
  %v1460 = vadd.f32 %v1416, %v1459
  %v1461 = vpop.f32.mrf.mxu0
  %v1462 = vpop.f32.mrf.mxu0
  %v1463 = vadd.f32 %v1419, %v1462
  %v1464 = vpop.f32.mrf.mxu0
  %1465 = vdwg.mxu0
  %1466 = vrot.lane.b32.xlu0 %v1185, 64
  %v1467 = vpop.permute.xlu0 %1466
  %v1470 = vsel %vm494, %v1372, 0
  %1472 = vmatprep.subr.bf16.mxu0 0
  %1473 = vmatpush1.bf16.msra.mxu0 0
  %1474 = vmatprep.subr.bf16.mxu0 0
  %1475 = vmatpush1.bf16.msra.mxu0 0
  %1476 = vmatprep.subr.bf16.mxu0 0
  %1477 = vmatpush1.bf16.msra.mxu0 0
  %1478 = vmatprep.subr.bf16.mxu0 0
  %1479 = vmatpush1.bf16.msra.mxu0 0
  %1480 = vmatprep.subr.bf16.mxu0 0
  %1481 = vmatpush1.bf16.msra.mxu0 0
  %1482 = vmatprep.subr.bf16.mxu0 0
  %1483 = vmatpush1.bf16.msra.mxu0 0
  %1484 = vmatprep.subr.bf16.mxu0 0
  %1485 = vmatpush1.bf16.msra.mxu0 0
  %1486 = vmatprep.subr.bf16.mxu0 0
  %1487 = vmatpush1.bf16.msra.mxu0 %v1467
  %1488 = vmatprep.subr.bf16.mxu0 0
  %1489 = vmatpush2.bf16.msra.mxu0 0
  %1490 = vmatprep.subr.bf16.mxu0 0
  %1491 = vmatpush2.bf16.msra.mxu0 0
  %1492 = vmatprep.subr.bf16.mxu0 0
  %1493 = vmatpush2.bf16.msra.mxu0 0
  %1494 = vmatprep.subr.bf16.mxu0 0
  %1495 = vmatpush2.bf16.msra.mxu0 0
  %1496 = vmatprep.subr.bf16.mxu0 0
  %1497 = vmatpush2.bf16.msra.mxu0 0
  %1498 = vmatprep.subr.bf16.mxu0 0
  %1499 = vmatpush2.bf16.msra.mxu0 0
  %1500 = vmatprep.subr.bf16.mxu0 0
  %1501 = vmatpush2.bf16.msra.mxu0 0
  %1502 = vmatprep.subr.bf16.mxu0 0
  %1503 = vmatpush2.bf16.msra.mxu0 0
  %1504 = vmatprep.mubr.bf16.mxu0 0
  %1505 = vmatmul.mubr.bf16.gmra.mxu0 %v1470
  %v1506 = vpop.f32.mrf.mxu0
  %v1507 = vadd.f32 0.0, %v1506
  %v1508 = vpop.f32.mrf.mxu0
  %v1509 = vpop.f32.mrf.mxu0
  %v1510 = vadd.f32 0.0, %v1509
  %v1511 = vpop.f32.mrf.mxu0
  %1512 = vdwg.mxu0
  %v1513 = vadd.f32 %v1460, %v1507
  %v1514 = vadd.f32 %v1463, %v1510
  %1515 = vrot.lane.b32.xlu0 %v1185, 32
  %v1516 = vpop.permute.xlu0 %1515
  %v1519 = vsel %vm494, %v1373, 0
  %1521 = vmatprep.subr.bf16.mxu0 0
  %1522 = vmatpush1.bf16.msra.mxu0 0
  %1523 = vmatprep.subr.bf16.mxu0 0
  %1524 = vmatpush1.bf16.msra.mxu0 0
  %1525 = vmatprep.subr.bf16.mxu0 0
  %1526 = vmatpush1.bf16.msra.mxu0 0
  %1527 = vmatprep.subr.bf16.mxu0 0
  %1528 = vmatpush1.bf16.msra.mxu0 0
  %1529 = vmatprep.subr.bf16.mxu0 0
  %1530 = vmatpush1.bf16.msra.mxu0 0
  %1531 = vmatprep.subr.bf16.mxu0 0
  %1532 = vmatpush1.bf16.msra.mxu0 0
  %1533 = vmatprep.subr.bf16.mxu0 0
  %1534 = vmatpush1.bf16.msra.mxu0 0
  %1535 = vmatprep.subr.bf16.mxu0 0
  %1536 = vmatpush1.bf16.msra.mxu0 %v1516
  %1537 = vmatprep.subr.bf16.mxu0 0
  %1538 = vmatpush2.bf16.msra.mxu0 0
  %1539 = vmatprep.subr.bf16.mxu0 0
  %1540 = vmatpush2.bf16.msra.mxu0 0
  %1541 = vmatprep.subr.bf16.mxu0 0
  %1542 = vmatpush2.bf16.msra.mxu0 0
  %1543 = vmatprep.subr.bf16.mxu0 0
  %1544 = vmatpush2.bf16.msra.mxu0 0
  %1545 = vmatprep.subr.bf16.mxu0 0
  %1546 = vmatpush2.bf16.msra.mxu0 0
  %1547 = vmatprep.subr.bf16.mxu0 0
  %1548 = vmatpush2.bf16.msra.mxu0 0
  %1549 = vmatprep.subr.bf16.mxu0 0
  %1550 = vmatpush2.bf16.msra.mxu0 0
  %1551 = vmatprep.subr.bf16.mxu0 0
  %1552 = vmatpush2.bf16.msra.mxu0 0
  %1553 = vmatprep.mubr.bf16.mxu0 0
  %1554 = vmatmul.mubr.bf16.gmra.mxu0 %v1519
  %v1555 = vpop.f32.mrf.mxu0
  %v1556 = vadd.f32 0.0, %v1555
  %v1557 = vpop.f32.mrf.mxu0
  %v1558 = vpop.f32.mrf.mxu0
  %v1559 = vadd.f32 0.0, %v1558
  %v1560 = vpop.f32.mrf.mxu0
  %1561 = vdwg.mxu0
  %v1562 = vadd.f32 %v1513, %v1556
  %v1563 = vadd.f32 %v1514, %v1559
  %v1564 = vadd.f32 %v1047, %v1562
  %v1565 = vadd.f32 %v1048, %v1563
  %s1566 = scalar_lea.vmem %s11, 1
  %v1567 = vld [vmem:[%s1566] sm:$0x1]
  %v1569 = vlaneseq
  %v1570 = vshrl.u32 %v1569, 7
  %v1571 = vsub.s32 0, %v1570
  %v1572 = vrot.slane %v1567, %v1571
  %v1574 = vadd.f32 %v1564, %v1572
  %v1575 = vadd.f32 %v1565, %v1572
  %s1576 = scalar_lea.vmem %s12, 1
  %v1577 = vld [vmem:[%s1576] sm:$0x1]
  %s1578 = scalar_lea.vmem %s13, 1
  %v1579 = vld [vmem:[%s1578] sm:$0x1]
  %v1580 = vsel %vm191, %v1574, 0.0
  %1581 = vadd.xlane.f32.xlu0 %v1580
  %v1582 = vpop.xlane.xlu0 %1581
  %v1583 = vsel %vm191, %v1575, 0.0
  %1584 = vadd.xlane.f32.xlu0 %v1583
  %v1585 = vpop.xlane.xlu0 %1584
  %v1586 = vmul.f32 %v1582, %v198
  %v1587 = vmul.f32 %v1585, %v198
  %v1588 = vsub.f32 %v1574, %v1586
  %v1589 = vsub.f32 %v1575, %v1587
  %v1590 = vmul.f32 %v1588, %v1588
  %v1591 = vmul.f32 %v1589, %v1589
  %v1592 = vsel %vm191, %v1590, 0.0
  %1593 = vadd.xlane.f32.xlu0 %v1592
  %v1594 = vpop.xlane.xlu0 %1593
  %v1595 = vsel %vm191, %v1591, 0.0
  %1596 = vadd.xlane.f32.xlu0 %v1595
  %v1597 = vpop.xlane.xlu0 %1596
  %v1598 = vmul.f32 %v1594, %v198
  %v1599 = vmul.f32 %v1597, %v198
  %v1600 = vadd.f32 %v1598, 1e-12
  %v1601 = vadd.f32 %v1599, 1e-12
  %v1602 = vrsqrt.pop %v1600
  %v1603 = vrsqrt.pop %v1601
  %v1604 = vmul.f32 %v1588, %v1602
  %v1605 = vmul.f32 %v1589, %v1603
  %v1607 = vlaneseq
  %v1608 = vshrl.u32 %v1607, 7
  %v1609 = vsub.s32 0, %v1608
  %v1610 = vrot.slane %v1577, %v1609
  %v1612 = vmul.f32 %v1604, %v1610
  %v1613 = vmul.f32 %v1605, %v1610
  %v1615 = vlaneseq
  %v1616 = vshrl.u32 %v1615, 7
  %v1617 = vsub.s32 0, %v1616
  %v1618 = vrot.slane %v1579, %v1617
  %v1620 = vadd.f32 %v1612, %v1618
  %v1621 = vadd.f32 %v1613, %v1618
  %v1622 = vpack.c.bf16 %v1621, %v1620
  %s1623 = scalar_lea.vmem %s14, 16
  %v1624 = vld [vmem:[%s1623] sm:$0xf]
  %v1625 = vld [vmem:[%s1623 + $0x4] sm:$0xf]
  %v1626 = vld [vmem:[%s1623 + $0x8] sm:$0xf]
  %v1627 = vld [vmem:[%s1623 + $0xc] sm:$0xf]
  %s1628 = scalar_lea.vmem %s15, 1
  %v1629 = vld [vmem:[%s1628] sm:$0x1]
  %v1631 = vlaneseq
  %v1632 = vshrl.u32 %v1631, 7
  %v1633 = vsub.s32 0, %v1632
  %v1634 = vrot.slane %v1629, %v1633
  %v1640 = vunpack.c.l.b16 %v1624
  %v1641 = vunpack.c.l.b16 %v1625
  %v1642 = vunpack.c.l.b16 %v1626
  %v1643 = vunpack.c.l.b16 %v1627
  %v1644 = vpack.c.b16 %v1641, %v1640
  %v1645 = vpack.c.b16 %v1643, %v1642
  %v1649 = vsel %vm191, %v1622, 0
  %1651 = vmatprep.subr.bf16.mxu0 0
  %1652 = vmatpush1.bf16.msra.mxu0 0
  %1653 = vmatprep.subr.bf16.mxu0 0
  %1654 = vmatpush1.bf16.msra.mxu0 0
  %1655 = vmatprep.subr.bf16.mxu0 0
  %1656 = vmatpush1.bf16.msra.mxu0 0
  %1657 = vmatprep.subr.bf16.mxu0 0
  %1658 = vmatpush1.bf16.msra.mxu0 0
  %1659 = vmatprep.subr.bf16.mxu0 0
  %1660 = vmatpush1.bf16.msra.mxu0 0
  %1661 = vmatprep.subr.bf16.mxu0 0
  %1662 = vmatpush1.bf16.msra.mxu0 0
  %1663 = vmatprep.subr.bf16.mxu0 0
  %1664 = vmatpush1.bf16.msra.mxu0 %v1645
  %1665 = vmatprep.subr.bf16.mxu0 0
  %1666 = vmatpush1.bf16.msra.mxu0 %v1644
  %1667 = vmatprep.subr.bf16.mxu0 0
  %1668 = vmatpush2.bf16.msra.mxu0 0
  %1669 = vmatprep.subr.bf16.mxu0 0
  %1670 = vmatpush2.bf16.msra.mxu0 0
  %1671 = vmatprep.subr.bf16.mxu0 0
  %1672 = vmatpush2.bf16.msra.mxu0 0
  %1673 = vmatprep.subr.bf16.mxu0 0
  %1674 = vmatpush2.bf16.msra.mxu0 0
  %1675 = vmatprep.subr.bf16.mxu0 0
  %1676 = vmatpush2.bf16.msra.mxu0 0
  %1677 = vmatprep.subr.bf16.mxu0 0
  %1678 = vmatpush2.bf16.msra.mxu0 0
  %1679 = vmatprep.subr.bf16.mxu0 0
  %1680 = vmatpush2.bf16.msra.mxu0 0
  %1681 = vmatprep.subr.bf16.mxu0 0
  %1682 = vmatpush2.bf16.msra.mxu0 0
  %1683 = vmatprep.mubr.bf16.mxu0 0
  %1684 = vmatmul.mubr.bf16.gmra.mxu0 %v1649
  %v1685 = vpop.f32.mrf.mxu0
  %v1686 = vadd.f32 %v1634, %v1685
  %v1687 = vpop.f32.mrf.mxu0
  %v1688 = vpop.f32.mrf.mxu0
  %v1689 = vadd.f32 %v1634, %v1688
  %v1690 = vpop.f32.mrf.mxu0
  %1691 = vdwg.mxu0
  %v1692 = vmul.f32 %v1686, 0.5
  %v1693 = vmul.f32 %v1689, 0.5
  %v1694 = vmul.f32 %v1686, 0.044715
  %v1695 = vmul.f32 %v1689, 0.044715
  %v1696 = vmul.f32 %v1694, %v1686
  %v1697 = vmul.f32 %v1695, %v1689
  %v1698 = vmul.f32 %v1696, %v1686
  %v1699 = vmul.f32 %v1697, %v1689
  %v1700 = vadd.f32 %v1686, %v1698
  %v1701 = vadd.f32 %v1689, %v1699
  %v1702 = vmul.f32 %v1700, 0.7978846
  %v1703 = vmul.f32 %v1701, 0.7978846
  %v1704 = vtanh.pop %v1702
  %v1705 = vtanh.pop %v1703
  %v1706 = vadd.f32 %v1704, 1.0
  %v1707 = vadd.f32 %v1705, 1.0
  %v1708 = vmul.f32 %v1692, %v1706
  %v1709 = vmul.f32 %v1693, %v1707
  %v1710 = vpack.c.bf16 %v1709, %v1708
  %s1711 = scalar_lea.vmem %s16, 32
  %v1712 = vld [vmem:[%s1711] sm:$0xf]
  %v1713 = vld [vmem:[%s1711 + $0x4] sm:$0xf]
  %v1714 = vld [vmem:[%s1711 + $0x8] sm:$0xf]
  %v1715 = vld [vmem:[%s1711 + $0xc] sm:$0xf]
  %v1716 = vld [vmem:[%s1711 + $0x10] sm:$0xf]
  %v1717 = vld [vmem:[%s1711 + $0x14] sm:$0xf]
  %v1718 = vld [vmem:[%s1711 + $0x18] sm:$0xf]
  %v1719 = vld [vmem:[%s1711 + $0x1c] sm:$0xf]
  %s1720 = scalar_lea.vmem %s17, 1
  %v1721 = vld [vmem:[%s1720] sm:$0x1]
  %v1723 = vlaneseq
  %v1724 = vshrl.u32 %v1723, 7
  %v1725 = vsub.s32 0, %v1724
  %v1726 = vrot.slane %v1721, %v1725
  %v1736 = vunpack.c.l.b16 %v1712
  %v1737 = vunpack.c.l.b16 %v1713
  %v1738 = vunpack.c.l.b16 %v1714
  %v1739 = vunpack.c.l.b16 %v1715
  %v1740 = vunpack.c.l.b16 %v1716
  %v1741 = vunpack.c.l.b16 %v1717
  %v1742 = vunpack.c.l.b16 %v1718
  %v1743 = vunpack.c.l.b16 %v1719
  %v1744 = vpack.c.b16 %v1737, %v1736
  %v1745 = vpack.c.b16 %v1739, %v1738
  %v1746 = vpack.c.b16 %v1741, %v1740
  %v1747 = vpack.c.b16 %v1743, %v1742
  %v1753 = vsel %vm958, %v1710, 0
  %1755 = vmatprep.subr.bf16.mxu0 0
  %1756 = vmatpush1.bf16.msra.mxu0 0
  %1757 = vmatprep.subr.bf16.mxu0 0
  %1758 = vmatpush1.bf16.msra.mxu0 0
  %1759 = vmatprep.subr.bf16.mxu0 0
  %1760 = vmatpush1.bf16.msra.mxu0 0
  %1761 = vmatprep.subr.bf16.mxu0 0
  %1762 = vmatpush1.bf16.msra.mxu0 0
  %1763 = vmatprep.subr.bf16.mxu0 0
  %1764 = vmatpush1.bf16.msra.mxu0 %v1747
  %1765 = vmatprep.subr.bf16.mxu0 0
  %1766 = vmatpush1.bf16.msra.mxu0 %v1746
  %1767 = vmatprep.subr.bf16.mxu0 0
  %1768 = vmatpush1.bf16.msra.mxu0 %v1745
  %1769 = vmatprep.subr.bf16.mxu0 0
  %1770 = vmatpush1.bf16.msra.mxu0 %v1744
  %1771 = vmatprep.subr.bf16.mxu0 0
  %1772 = vmatpush2.bf16.msra.mxu0 0
  %1773 = vmatprep.subr.bf16.mxu0 0
  %1774 = vmatpush2.bf16.msra.mxu0 0
  %1775 = vmatprep.subr.bf16.mxu0 0
  %1776 = vmatpush2.bf16.msra.mxu0 0
  %1777 = vmatprep.subr.bf16.mxu0 0
  %1778 = vmatpush2.bf16.msra.mxu0 0
  %1779 = vmatprep.subr.bf16.mxu0 0
  %1780 = vmatpush2.bf16.msra.mxu0 0
  %1781 = vmatprep.subr.bf16.mxu0 0
  %1782 = vmatpush2.bf16.msra.mxu0 0
  %1783 = vmatprep.subr.bf16.mxu0 0
  %1784 = vmatpush2.bf16.msra.mxu0 0
  %1785 = vmatprep.subr.bf16.mxu0 0
  %1786 = vmatpush2.bf16.msra.mxu0 0
  %1787 = vmatprep.mubr.bf16.mxu0 0
  %1788 = vmatmul.mubr.bf16.gmra.mxu0 %v1753
  %v1789 = vpop.f32.mrf.mxu0
  %v1790 = vadd.f32 %v1726, %v1789
  %v1791 = vpop.f32.mrf.mxu0
  %v1792 = vpop.f32.mrf.mxu0
  %v1793 = vadd.f32 %v1726, %v1792
  %v1794 = vpop.f32.mrf.mxu0
  %1795 = vdwg.mxu0
  %v1796 = vadd.f32 %v1620, %v1790
  %v1797 = vadd.f32 %v1621, %v1793
  %s1798 = scalar_lea.vmem %s18, 1
  %v1799 = vld [vmem:[%s1798] sm:$0x1]
  %s1800 = scalar_lea.vmem %s19, 1
  %v1801 = vld [vmem:[%s1800] sm:$0x1]
  %v1802 = vsel %vm191, %v1796, 0.0
  %1803 = vadd.xlane.f32.xlu0 %v1802
  %v1804 = vpop.xlane.xlu0 %1803
  %v1805 = vsel %vm191, %v1797, 0.0
  %1806 = vadd.xlane.f32.xlu0 %v1805
  %v1807 = vpop.xlane.xlu0 %1806
  %v1808 = vmul.f32 %v1804, %v198
  %v1809 = vmul.f32 %v1807, %v198
  %v1810 = vsub.f32 %v1796, %v1808
  %v1811 = vsub.f32 %v1797, %v1809
  %v1812 = vmul.f32 %v1810, %v1810
  %v1813 = vmul.f32 %v1811, %v1811
  %v1814 = vsel %vm191, %v1812, 0.0
  %1815 = vadd.xlane.f32.xlu0 %v1814
  %v1816 = vpop.xlane.xlu0 %1815
  %v1817 = vsel %vm191, %v1813, 0.0
  %1818 = vadd.xlane.f32.xlu0 %v1817
  %v1819 = vpop.xlane.xlu0 %1818
  %v1820 = vmul.f32 %v1816, %v198
  %v1821 = vmul.f32 %v1819, %v198
  %v1822 = vadd.f32 %v1820, 1e-12
  %v1823 = vadd.f32 %v1821, 1e-12
  %v1824 = vrsqrt.pop %v1822
  %v1825 = vrsqrt.pop %v1823
  %v1826 = vmul.f32 %v1810, %v1824
  %v1827 = vmul.f32 %v1811, %v1825
  %v1829 = vlaneseq
  %v1830 = vshrl.u32 %v1829, 7
  %v1831 = vsub.s32 0, %v1830
  %v1832 = vrot.slane %v1799, %v1831
  %v1834 = vmul.f32 %v1826, %v1832
  %v1835 = vmul.f32 %v1827, %v1832
  %v1837 = vlaneseq
  %v1838 = vshrl.u32 %v1837, 7
  %v1839 = vsub.s32 0, %v1838
  %v1840 = vrot.slane %v1801, %v1839
  %v1842 = vadd.f32 %v1834, %v1840
  %v1843 = vadd.f32 %v1835, %v1840
  %v1844 = vpack.c.bf16 %v1843, %v1842
  %v1845 = vld [vmem:[%s20] sm:$0xf]
  %v1846 = vld [vmem:[%s20 + $0x4] sm:$0xf]
  %v1847 = vld [vmem:[%s20 + $0x8] sm:$0xf]
  %v1848 = vld [vmem:[%s20 + $0xc] sm:$0xf]
  %v1849 = vld [vmem:[%s21] sm:$0x1]
  %v1851 = vlaneseq
  %v1852 = vshrl.u32 %v1851, 7
  %v1853 = vsub.s32 0, %v1852
  %v1854 = vrot.slane %v1849, %v1853
  %v1860 = vunpack.c.l.b16 %v1845
  %v1861 = vunpack.c.l.b16 %v1846
  %v1862 = vunpack.c.l.b16 %v1847
  %v1863 = vunpack.c.l.b16 %v1848
  %v1864 = vpack.c.b16 %v1861, %v1860
  %v1865 = vpack.c.b16 %v1863, %v1862
  %v1869 = vsel %vm191, %v1844, 0
  %1871 = vmatprep.subr.bf16.mxu0 0
  %1872 = vmatpush1.bf16.msra.mxu0 0
  %1873 = vmatprep.subr.bf16.mxu0 0
  %1874 = vmatpush1.bf16.msra.mxu0 0
  %1875 = vmatprep.subr.bf16.mxu0 0
  %1876 = vmatpush1.bf16.msra.mxu0 0
  %1877 = vmatprep.subr.bf16.mxu0 0
  %1878 = vmatpush1.bf16.msra.mxu0 0
  %1879 = vmatprep.subr.bf16.mxu0 0
  %1880 = vmatpush1.bf16.msra.mxu0 0
  %1881 = vmatprep.subr.bf16.mxu0 0
  %1882 = vmatpush1.bf16.msra.mxu0 0
  %1883 = vmatprep.subr.bf16.mxu0 0
  %1884 = vmatpush1.bf16.msra.mxu0 %v1865
  %1885 = vmatprep.subr.bf16.mxu0 0
  %1886 = vmatpush1.bf16.msra.mxu0 %v1864
  %1887 = vmatprep.subr.bf16.mxu0 0
  %1888 = vmatpush2.bf16.msra.mxu0 0
  %1889 = vmatprep.subr.bf16.mxu0 0
  %1890 = vmatpush2.bf16.msra.mxu0 0
  %1891 = vmatprep.subr.bf16.mxu0 0
  %1892 = vmatpush2.bf16.msra.mxu0 0
  %1893 = vmatprep.subr.bf16.mxu0 0
  %1894 = vmatpush2.bf16.msra.mxu0 0
  %1895 = vmatprep.subr.bf16.mxu0 0
  %1896 = vmatpush2.bf16.msra.mxu0 0
  %1897 = vmatprep.subr.bf16.mxu0 0
  %1898 = vmatpush2.bf16.msra.mxu0 0
  %1899 = vmatprep.subr.bf16.mxu0 0
  %1900 = vmatpush2.bf16.msra.mxu0 0
  %1901 = vmatprep.subr.bf16.mxu0 0
  %1902 = vmatpush2.bf16.msra.mxu0 0
  %1903 = vmatprep.mubr.bf16.mxu0 0
  %1904 = vmatmul.mubr.bf16.gmra.mxu0 %v1869
  %v1905 = vpop.f32.mrf.mxu0
  %v1906 = vadd.f32 %v1854, %v1905
  %v1907 = vpop.f32.mrf.mxu0
  %v1908 = vpop.f32.mrf.mxu0
  %v1909 = vadd.f32 %v1854, %v1908
  %v1910 = vpop.f32.mrf.mxu0
  %1911 = vdwg.mxu0
  %v1912 = vtanh.pop %v1906
  %v1913 = vtanh.pop %v1909
  %v1914 = vld [vmem:[%s22] sm:$0x1]
  %v1916 = vlaneseq
  %v1917 = vshrl.u32 %v1916, 7
  %v1918 = vsub.s32 0, %v1917
  %v1919 = vrot.slane %v1914, %v1918
  %v1921 = vmul.f32 %v1912, %v1919
  %v1922 = vmul.f32 %v1913, %v1919
  %v1923 = vsel %vm191, %v1921, 0.0
  %1924 = vadd.xlane.f32.xlu0 %v1923
  %v1925 = vpop.xlane.xlu0 %1924
  %v1926 = vsel %vm191, %v1922, 0.0
  %1927 = vadd.xlane.f32.xlu0 %v1926
  %v1928 = vpop.xlane.xlu0 %1927
  %v1929 = vld [vmem:[#allocation2] sm:$0x1]
  %v1931 = vlaneseq
  %v1932 = vshrl.u32 %v1931, 7
  %v1933 = vsub.s32 0, %v1932
  %v1934 = vrot.slane %v1929, %v1933
  %v1936 = vadd.f32 %v1925, %v1934
  %v1937 = vadd.f32 %v1928, %v1934
  %v1938 = vsub.f32 0.0, %v1936
  %v1939 = vsub.f32 0.0, %v1937
  %v1940 = vmul.f32 %v1938, 1.442695
  %v1941 = vpow.pop %v1940
  %v1942 = vmul.f32 %v1939, 1.442695
  %v1943 = vpow.pop %v1942
  %v1944 = vadd.f32 %v1941, 1.0
  %v1945 = vadd.f32 %v1943, 1.0
  %v1946 = vrcp.pop %v1944
  %v1947 = vmul.f32 1.0, %v1946
  %v1948 = vrcp.pop %v1945
  %v1949 = vmul.f32 1.0, %v1948
  %1951 = vset.pattern.permute.xlu0 0
  %1952 = vperm.xlu0 %1951, %v1947
  %v1953 = vpop.permute.xlu0 %1952
  %1956 = vset.pattern.permute.xlu0 0
  %1957 = vperm.xlu0 %1956, %v1949
  %v1958 = vpop.permute.xlu0 %1957
  %1960 = vst [vmem:[%s24] sm:$0xff] %v1953
  %1961 = vst [vmem:[%s24 + $0x8] sm:$0xff] %v1958
  // Predicated region
  $region98: #{scam_detector_forward.1} parent=0 // pred_check
    _
  $region99: #{scam_detector_forward.1} parent=0 // pred_check_branch
    %1963 = sbr.rel (0) target = $region101
  $region100: #{scam_detector_forward.1} parent=0 // pred_region
    _
  $region101: #{scam_detector_forward.1} parent=0 // pred_fallthru
    _
  // Predicated region
  $region102: #{scam_detector_forward.1} parent=0 // pred_check
    _
  $region103: #{scam_detector_forward.1} parent=0 // pred_check_branch
    %1965 = sbr.rel (0) target = $region105
  $region104: #{scam_detector_forward.1} parent=0 // pred_region
    _
  $region105: #{scam_detector_forward.1} parent=0 // pred_fallthru
    _

</llo_original>
